<compile_context>
chip_gen: v6e
topology: v6e:2x2x1
jax: 0.10.0
libtpu: 0.0.40
codegen_flags: <defaults>
</compile_context>

<pallas_src>
import functools

import jax
import jax.numpy as jnp
from jax.experimental import pallas as pl
from jax.experimental.pallas import tpu as pltpu

BN_EPS = 1e-5


def _round_up(x, m):
    return ((x + m - 1) // m) * m


def _pick_tile(dim, candidates):
    for c in candidates:
        if c <= dim and dim % c == 0:
            return c
    return dim


# --------------- Pass 1: tiled bf16 GEMM + partial BN statistics ---------------

def _gemm_stats_kernel(p_ref, w_ref, y_ref, sum_ref, sq_ref, acc_ref):
    # p_ref:   [TM, TK]    bf16 im2col patch tile
    # w_ref:   [TK, TN]    bf16 weight tile
    # y_ref:   [TM, TN]    f32 conv output tile
    # sum_ref: [1, 1, TN]  f32 partial per-channel sum for this (M-tile, C-tile)
    # sq_ref:  [1, 1, TN]  f32 partial per-channel sum of squares
    # acc_ref: [TM, TN]    f32 VMEM accumulator, resident across the K axis
    k = pl.program_id(2)

    @pl.when(k == 0)
    def _():
        acc_ref[...] = jnp.zeros_like(acc_ref)

    acc_ref[...] += jnp.dot(p_ref[...], w_ref[...],
                            preferred_element_type=jnp.float32)

    @pl.when(k == pl.num_programs(2) - 1)
    def _():
        y = acc_ref[...]
        y_ref[...] = y
        sum_ref[...] = jnp.sum(y, axis=0, keepdims=True)[None]
        sq_ref[...] = jnp.sum(y * y, axis=0, keepdims=True)[None]


# --------------- Pass 2: folded BN affine (scale/shift) + SiLU ---------------

def _bn_silu_kernel(y_ref, scale_ref, shift_ref, o_ref):
    z = y_ref[...] * scale_ref[...] + shift_ref[...]
    o_ref[...] = z * jax.nn.sigmoid(z)


def _im2col_nhwc(x_nhwc, kernel_size, stride, padding):
    """[N,H,W,C] -> [N,H_out,W_out,kH*kW*C] with patch ordering (dy, dx, c_in)."""
    n, h, w, c = x_nhwc.shape
    xp = jnp.pad(x_nhwc, ((0, 0), (padding, padding), (padding, padding), (0, 0)))
    h_out = (h + 2 * padding - kernel_size) // stride + 1
    w_out = (w + 2 * padding - kernel_size) // stride + 1
    cols = []
    for dy in range(kernel_size):
        for dx in range(kernel_size):
            cols.append(xp[:, dy:dy + stride * h_out:stride,
                           dx:dx + stride * w_out:stride, :])
    patches = jnp.concatenate(cols, axis=-1)
    return patches, h_out, w_out


@functools.partial(jax.jit, static_argnames=("kernel_size", "stride", "groups"))
def conv_bn_act(x_nchw, conv_weight, bn_gamma, bn_beta, *, kernel_size, stride=1,
                groups=1):
    """Forward pass of ConvBNAct (act=True).

    x_nchw:      [N, C_in, H, W]          (PyTorch layout)
    conv_weight: [C_out, C_in, kH, kW]    (PyTorch layout, bias=False)
    bn_gamma, bn_beta: [C_out]
    returns:     [N, C_out, H_out, W_out] (PyTorch layout), float32
    """
    assert groups == 1  # TODO(synk): grouped convolution not implemented in this kernel.
    padding = kernel_size // 2  # matches the module (assumes odd "same"-style kernels)

    n, c_in, h, w = x_nchw.shape
    c_out = conv_weight.shape[0]

    # NCHW -> NHWC + im2col in bf16 (halves layout/DMA bytes; MXU is bf16-native).
    x_nhwc = jnp.transpose(x_nchw.astype(jnp.bfloat16), (0, 2, 3, 1))
    patches, h_out, w_out = _im2col_nhwc(x_nhwc, kernel_size, stride, padding)
    # TODO(synk): replace host-side im2col with implicit shifted-window accumulation
    # inside the kernel to avoid the k^2 HBM inflation of the activation stream.

    m = n * h_out * w_out
    k_dim = kernel_size * kernel_size * c_in
    patches = patches.reshape(m, k_dim)

    # PyTorch [C_out, C_in, kH, kW] -> [kH, kW, C_in, C_out] -> [K, C_out],
    # matching the (dy, dx, c_in) patch ordering.
    w_mat = jnp.transpose(conv_weight, (2, 3, 1, 0)).reshape(k_dim, c_out)
    w_mat = w_mat.astype(jnp.bfloat16)

    # ----- pad to TPU-friendly, lane-dense shapes and pick tiles -----
    c_out_p = _round_up(c_out, 128)
    k_pad = _round_up(k_dim, 128)
    if m >= 512:
        tm = 512
        m_pad = _round_up(m, tm)
    else:
        m_pad = _round_up(m, 16)
        tm = m_pad
    tn = _pick_tile(c_out_p, (256, 128))
    tk = _pick_tile(k_pad, (512, 256, 128))

    patches = jnp.pad(patches, ((0, m_pad - m), (0, k_pad - k_dim)))
    w_mat = jnp.pad(w_mat, ((0, k_pad - k_dim), (0, c_out_p - c_out)))

    m_tiles = m_pad // tm
    n_tiles = c_out_p // tn
    k_tiles = k_pad // tk

    gemm_cost = pl.CostEstimate(
        flops=2 * m_pad * k_pad * c_out_p,
        transcendentals=0,
        bytes_accessed=(m_pad * k_pad * 2 + k_pad * c_out_p * 2
                        + m_pad * c_out_p * 4 + 2 * m_tiles * c_out_p * 4),
    )

    y_f32, part_sum, part_sq = pl.pallas_call(
        _gemm_stats_kernel,
        out_shape=(
            jax.ShapeDtypeStruct((m_pad, c_out_p), jnp.float32),
            jax.ShapeDtypeStruct((m_tiles, 1, c_out_p), jnp.float32),
            jax.ShapeDtypeStruct((m_tiles, 1, c_out_p), jnp.float32),
        ),
        grid_spec=pltpu.PrefetchScalarGridSpec(
            num_scalar_prefetch=0,
            grid=(m_tiles, n_tiles, k_tiles),
            in_specs=[
                pl.BlockSpec((tm, tk), lambda i, j, k: (i, k)),
                pl.BlockSpec((tk, tn), lambda i, j, k: (k, j)),
            ],
            out_specs=[
                pl.BlockSpec((tm, tn), lambda i, j, k: (i, j)),
                pl.BlockSpec((1, 1, tn), lambda i, j, k: (i, 0, j)),
                pl.BlockSpec((1, 1, tn), lambda i, j, k: (i, 0, j)),
            ],
            scratch_shapes=[pltpu.VMEM((tm, tn), jnp.float32)],
        ),
        compiler_params=pltpu.CompilerParams(
            dimension_semantics=("parallel", "parallel", "arbitrary"),
            vmem_limit_bytes=32 << 20,
        ),
        cost_estimate=gemm_cost,
    )(patches, w_mat)

    # ----- finalize BN statistics (tiny per-channel math, plain JAX, f32) -----
    # Zero-padded rows / weight columns contribute nothing to the sums, so
    # dividing by the real row count `m` gives exact batch statistics.
    total_sum = jnp.sum(part_sum, axis=(0, 1))        # [C_out_p]
    total_sq = jnp.sum(part_sq, axis=(0, 1))          # [C_out_p]
    inv_m = 1.0 / float(m)
    mean = total_sum * inv_m
    var = jnp.maximum(total_sq * inv_m - mean * mean, 0.0)   # biased variance
    gamma_p = jnp.pad(bn_gamma.astype(jnp.float32), (0, c_out_p - c_out))
    beta_p = jnp.pad(bn_beta.astype(jnp.float32), (0, c_out_p - c_out))
    scale_vec = gamma_p * jax.lax.rsqrt(var + BN_EPS)
    shift_vec = beta_p - mean * scale_vec
    scale = scale_vec.reshape(1, c_out_p)
    shift = shift_vec.reshape(1, c_out_p)

    act_cost = pl.CostEstimate(
        flops=4 * m_pad * c_out_p,
        transcendentals=m_pad * c_out_p,
        bytes_accessed=2 * m_pad * c_out_p * 4 + 2 * c_out_p * 4,
    )

    out_flat = pl.pallas_call(
        _bn_silu_kernel,
        out_shape=jax.ShapeDtypeStruct((m_pad, c_out_p), jnp.float32),
        grid_spec=pltpu.PrefetchScalarGridSpec(
            num_scalar_prefetch=0,
            grid=(m_tiles, n_tiles),
            in_specs=[
                pl.BlockSpec((tm, tn), lambda i, j: (i, j)),
                pl.BlockSpec((1, tn), lambda i, j: (0, j)),
                pl.BlockSpec((1, tn), lambda i, j: (0, j)),
            ],
            out_specs=pl.BlockSpec((tm, tn), lambda i, j: (i, j)),
        ),
        compiler_params=pltpu.CompilerParams(
            dimension_semantics=("parallel", "parallel"),
            vmem_limit_bytes=32 << 20,
        ),
        cost_estimate=act_cost,
    )(y_f32, scale, shift)

    out_nhwc = out_flat[:m, :c_out].reshape(n, h_out, w_out, c_out)
    return jnp.transpose(out_nhwc, (0, 3, 1, 2))  # back to NCHW


if __name__ == "__main__":
    # ConvBNAct(in_channels=4, out_channels=8, kernel_size=3), small deterministic shapes.
    key = jax.random.PRNGKey(0)
    k_x, k_w = jax.random.split(key)

    N, C_IN, H, W = 2, 4, 16, 16
    C_OUT, KSIZE = 8, 3

    x = jax.random.normal(k_x, (N, C_IN, H, W), dtype=jnp.float32)

    fan_in = C_IN * KSIZE * KSIZE
    conv_w = jax.random.normal(k_w, (C_OUT, C_IN, KSIZE, KSIZE), dtype=jnp.float32) * (
        (2.0 / fan_in) ** 0.5
    )
    gamma = jnp.ones((C_OUT,), dtype=jnp.float32)
    beta = jnp.zeros((C_OUT,), dtype=jnp.float32)

    out = conv_bn_act(x, conv_w, gamma, beta, kernel_size=KSIZE, stride=1, groups=1)
    jax.block_until_ready(out)

    assert out.shape == (N, C_OUT, H, W), out.shape
    assert bool(jnp.all(jnp.isfinite(out)))

    # Pure-JAX f32 reference: Conv2d -> BatchNorm2d (training batch stats) -> SiLU.
    def ref_fn(xr, wr, g, b):
        y = jax.lax.conv_general_dilated(
            xr, wr, window_strides=(1, 1),
            padding=((KSIZE // 2, KSIZE // 2), (KSIZE // 2, KSIZE // 2)),
            dimension_numbers=("NCHW", "OIHW", "NCHW"))
        mean = jnp.mean(y, axis=(0, 2, 3), keepdims=True)
        var = jnp.mean((y - mean) ** 2, axis=(0, 2, 3), keepdims=True)
        z = (y - mean) * jax.lax.rsqrt(var + BN_EPS)
        z = z * g.reshape(1, -1, 1, 1) + b.reshape(1, -1, 1, 1)
        return z * jax.nn.sigmoid(z)

    ref = ref_fn(x, conv_w, gamma, beta)
    max_err = float(jnp.max(jnp.abs(out - ref)))
    # bf16 MXU operands -> small deviation from the f32 reference is expected.
    assert max_err < 1e-1, f"max abs err vs reference: {max_err}"

    print("KERNEL_OK")
</pallas_src>

<mosaic_0001>
module attributes {stable_mosaic.version = 11 : i64} {
  func.func @_gemm_stats_kernel(%arg0: i32, %arg1: i32, %arg2: i32, %arg3: memref<512x128xbf16, #tpu.memory_space<vmem>>, %arg4: memref<128x128xbf16, #tpu.memory_space<vmem>>, %arg5: memref<512x128xf32, #tpu.memory_space<vmem>>, %arg6: memref<1x1x128xf32, #tpu.memory_space<vmem>>, %arg7: memref<1x1x128xf32, #tpu.memory_space<vmem>>, %arg8: memref<512x128xf32, #tpu.memory_space<vmem>>) attributes {dimension_semantics = [#tpu.dimension_semantics<parallel>, #tpu.dimension_semantics<parallel>, #tpu.dimension_semantics<arbitrary>], iteration_bounds = array<i64: 1, 1, 1>, scalar_prefetch = 0 : i64, scratch_operands = 1 : i64, tpu.core_type = #tpu.core_type<tc>, window_params = [{transform_indices = @transform_0, window_bounds = array<i64: 512, 128>}, {transform_indices = @transform_1, window_bounds = array<i64: 128, 128>}, {transform_indices = @transform_2, window_bounds = array<i64: 512, 128>}, {transform_indices = @transform_3, window_bounds = array<i64: 1, 1, 128>}, {transform_indices = @transform_4, window_bounds = array<i64: 1, 1, 128>}]} {
    %c0_i32 = arith.constant 0 : i32
    %0 = arith.cmpi eq, %arg2, %c0_i32 : i32
    %1 = arith.extui %0 : i1 to i32
    %c0_i32_0 = arith.constant 0 : i32
    %2 = arith.cmpi ne, %1, %c0_i32_0 : i32
    scf.if %2 {
      %cst_10 = arith.constant 0.000000e+00 : f32
      %12 = vector.broadcast %cst_10 : f32 to vector<512x128xf32>
      %c0_11 = arith.constant 0 : index
      %c0_12 = arith.constant 0 : index
      %13 = vector.load %arg8[%c0_11, %c0_12] : memref<512x128xf32, #tpu.memory_space<vmem>>, vector<512x128xf32>
      tpu.vector_store %arg8[%c0_11, %c0_12], %12 {strides = array<i32>} : memref<512x128xf32, #tpu.memory_space<vmem>>, vector<512x128xf32>,
    } else {
    }
    %c0 = arith.constant 0 : index
    %c0_1 = arith.constant 0 : index
    %3 = vector.load %arg8[%c0, %c0_1] : memref<512x128xf32, #tpu.memory_space<vmem>>, vector<512x128xf32>
    %c0_2 = arith.constant 0 : index
    %c0_3 = arith.constant 0 : index
    %4 = vector.load %arg3[%c0_2, %c0_3] : memref<512x128xbf16, #tpu.memory_space<vmem>>, vector<512x128xbf16>
    %c0_4 = arith.constant 0 : index
    %c0_5 = arith.constant 0 : index
    %5 = vector.load %arg4[%c0_4, %c0_5] : memref<128x128xbf16, #tpu.memory_space<vmem>>, vector<128x128xbf16>
    %cst = arith.constant dense<0.000000e+00> : vector<512x128xf32>
    %6 = tpu.matmul %4, %5, %cst {dimension_numbers = #tpu.dot_dimension_numbers<[1], [0], [0], [1], [0, 0, 1, 1], [], []>} : vector<512x128xbf16>, vector<128x128xbf16>, vector<512x128xf32> -> vector<512x128xf32>
    %7 = arith.addf %3, %6 : vector<512x128xf32>
    %c0_6 = arith.constant 0 : index
    %c0_7 = arith.constant 0 : index
    %8 = vector.load %arg8[%c0_6, %c0_7] : memref<512x128xf32, #tpu.memory_space<vmem>>, vector<512x128xf32>
    tpu.vector_store %arg8[%c0_6, %c0_7], %7 {strides = array<i32>} : memref<512x128xf32, #tpu.memory_space<vmem>>, vector<512x128xf32>,
    %c0_i32_8 = arith.constant 0 : i32
    %9 = arith.cmpi eq, %arg2, %c0_i32_8 : i32
    %10 = arith.extui %9 : i1 to i32
    %c0_i32_9 = arith.constant 0 : i32
    %11 = arith.cmpi ne, %10, %c0_i32_9 : i32
    scf.if %11 {
      %c0_10 = arith.constant 0 : index
      %c0_11 = arith.constant 0 : index
      %12 = vector.load %arg8[%c0_10, %c0_11] : memref<512x128xf32, #tpu.memory_space<vmem>>, vector<512x128xf32>
      %c0_12 = arith.constant 0 : index
      %c0_13 = arith.constant 0 : index
      %13 = vector.load %arg5[%c0_12, %c0_13] : memref<512x128xf32, #tpu.memory_space<vmem>>, vector<512x128xf32>
      tpu.vector_store %arg5[%c0_12, %c0_13], %12 {strides = array<i32>} : memref<512x128xf32, #tpu.memory_space<vmem>>, vector<512x128xf32>,
      %cst_14 = arith.constant dense<0.000000e+00> : vector<128xf32>
      %14 = vector.multi_reduction <add>, %12, %cst_14 [0] : vector<512x128xf32> to vector<128xf32>
      %15 = vector.shape_cast %14 : vector<128xf32> to vector<1x128xf32>
      %16 = vector.shape_cast %15 : vector<1x128xf32> to vector<1x1x128xf32>
      %c0_15 = arith.constant 0 : index
      %c0_16 = arith.constant 0 : index
      %c0_17 = arith.constant 0 : index
      %17 = vector.load %arg6[%c0_15, %c0_16, %c0_17] : memref<1x1x128xf32, #tpu.memory_space<vmem>>, vector<1x1x128xf32>
      tpu.vector_store %arg6[%c0_15, %c0_16, %c0_17], %16 {strides = array<i32>} : memref<1x1x128xf32, #tpu.memory_space<vmem>>, vector<1x1x128xf32>,
      %18 = arith.mulf %12, %12 : vector<512x128xf32>
      %cst_18 = arith.constant dense<0.000000e+00> : vector<128xf32>
      %19 = vector.multi_reduction <add>, %18, %cst_18 [0] : vector<512x128xf32> to vector<128xf32>
      %20 = vector.shape_cast %19 : vector<128xf32> to vector<1x128xf32>
      %21 = vector.shape_cast %20 : vector<1x128xf32> to vector<1x1x128xf32>
      %c0_19 = arith.constant 0 : index
      %c0_20 = arith.constant 0 : index
      %c0_21 = arith.constant 0 : index
      %22 = vector.load %arg7[%c0_19, %c0_20, %c0_21] : memref<1x1x128xf32, #tpu.memory_space<vmem>>, vector<1x1x128xf32>
      tpu.vector_store %arg7[%c0_19, %c0_20, %c0_21], %21 {strides = array<i32>} : memref<1x1x128xf32, #tpu.memory_space<vmem>>, vector<1x1x128xf32>,
    } else {
    }
    return
  }
  func.func @transform_0(%arg0: i32, %arg1: i32, %arg2: i32) -> (i32, i32) {
    %c0_i32 = arith.constant 0 : i32
    return %arg0, %arg2 : i32, i32
  }
  func.func @transform_1(%arg0: i32, %arg1: i32, %arg2: i32) -> (i32, i32) {
    %c0_i32 = arith.constant 0 : i32
    return %arg2, %arg1 : i32, i32
  }
  func.func @transform_2(%arg0: i32, %arg1: i32, %arg2: i32) -> (i32, i32) {
    %c0_i32 = arith.constant 0 : i32
    return %arg0, %arg1 : i32, i32
  }
  func.func @transform_3(%arg0: i32, %arg1: i32, %arg2: i32) -> (i32, i32, i32) {
    %c0_i32 = arith.constant 0 : i32
    %c0_i32_0 = arith.constant 0 : i32
    return %arg0, %c0_i32, %arg1 : i32, i32, i32
  }
  func.func @transform_4(%arg0: i32, %arg1: i32, %arg2: i32) -> (i32, i32, i32) {
    %c0_i32 = arith.constant 0 : i32
    %c0_i32_0 = arith.constant 0 : i32
    return %arg0, %c0_i32, %arg1 : i32, i32, i32
  }
}

module attributes {stable_mosaic.version = 11 : i64} {
  func.func @_bn_silu_kernel(%arg0: i32, %arg1: i32, %arg2: memref<512x128xf32, #tpu.memory_space<vmem>>, %arg3: memref<1x128xf32, #tpu.memory_space<vmem>>, %arg4: memref<1x128xf32, #tpu.memory_space<vmem>>, %arg5: memref<512x128xf32, #tpu.memory_space<vmem>>) attributes {dimension_semantics = [#tpu.dimension_semantics<parallel>, #tpu.dimension_semantics<parallel>], iteration_bounds = array<i64: 1, 1>, scalar_prefetch = 0 : i64, scratch_operands = 0 : i64, tpu.core_type = #tpu.core_type<tc>, window_params = [{transform_indices = @transform_0, window_bounds = array<i64: 512, 128>}, {transform_indices = @transform_1, window_bounds = array<i64: 1, 128>}, {transform_indices = @transform_2, window_bounds = array<i64: 1, 128>}, {transform_indices = @transform_3, window_bounds = array<i64: 512, 128>}]} {
    %c0 = arith.constant 0 : index
    %c0_0 = arith.constant 0 : index
    %0 = vector.load %arg2[%c0, %c0_0] : memref<512x128xf32, #tpu.memory_space<vmem>>, vector<512x128xf32>
    %c0_1 = arith.constant 0 : index
    %c0_2 = arith.constant 0 : index
    %1 = vector.load %arg3[%c0_1, %c0_2] : memref<1x128xf32, #tpu.memory_space<vmem>>, vector<1x128xf32>
    %2 = vector.broadcast %1 : vector<1x128xf32> to vector<512x128xf32>
    %3 = arith.mulf %0, %2 : vector<512x128xf32>
    %c0_3 = arith.constant 0 : index
    %c0_4 = arith.constant 0 : index
    %4 = vector.load %arg4[%c0_3, %c0_4] : memref<1x128xf32, #tpu.memory_space<vmem>>, vector<1x128xf32>
    %5 = vector.broadcast %4 : vector<1x128xf32> to vector<512x128xf32>
    %6 = arith.addf %3, %5 : vector<512x128xf32>
    %7 = arith.negf %6 : vector<512x128xf32>
    %8 = math.exp %7 : vector<512x128xf32>
    %cst = arith.constant 1.000000e+00 : f32
    %9 = vector.broadcast %cst : f32 to vector<512x128xf32>
    %10 = arith.addf %9, %8 : vector<512x128xf32>
    %11 = arith.divf %9, %10 : vector<512x128xf32>
    %12 = arith.mulf %6, %11 : vector<512x128xf32>
    %c0_5 = arith.constant 0 : index
    %c0_6 = arith.constant 0 : index
    %13 = vector.load %arg5[%c0_5, %c0_6] : memref<512x128xf32, #tpu.memory_space<vmem>>, vector<512x128xf32>
    tpu.vector_store %arg5[%c0_5, %c0_6], %12 {strides = array<i32>} : memref<512x128xf32, #tpu.memory_space<vmem>>, vector<512x128xf32>,
    return
  }
  func.func @transform_0(%arg0: i32, %arg1: i32) -> (i32, i32) {
    %c0_i32 = arith.constant 0 : i32
    return %arg0, %arg1 : i32, i32
  }
  func.func @transform_1(%arg0: i32, %arg1: i32) -> (i32, i32) {
    %c0_i32 = arith.constant 0 : i32
    %c0_i32_0 = arith.constant 0 : i32
    return %c0_i32, %arg1 : i32, i32
  }
  func.func @transform_2(%arg0: i32, %arg1: i32) -> (i32, i32) {
    %c0_i32 = arith.constant 0 : i32
    %c0_i32_0 = arith.constant 0 : i32
    return %c0_i32, %arg1 : i32, i32
  }
  func.func @transform_3(%arg0: i32, %arg1: i32) -> (i32, i32) {
    %c0_i32 = arith.constant 0 : i32
    return %arg0, %arg1 : i32, i32
  }
}

</mosaic_0001>

<llo_original>
// kernel: conv_bn_act.3
$region0: #{conv_bn_act.3}
  #allocation0 [shape = 'u32[]', space=smem, size = 0x4, offset = 0x4, fixed_abs, tag = 'smem constant byte address 0x4 - core index']
  #allocation1 [shape = 'u32[144,128]{1,0:T(1,128)}', space=vmem, size = 0x12000, scoped, tag = 'internal scratch']
  %s0 = inlined_call_operand.vmem [shape: f32[512,128], index: 0, kind: input, shape index: {}]
  %s1 = inlined_call_operand.vmem [shape: f32[1,128], index: 1, kind: input, shape index: {}]
  %s2 = inlined_call_operand.vmem [shape: f32[1,128], index: 2, kind: input, shape index: {}]
  %s3 = inlined_call_operand.vmem [shape: f32[512,128], index: 3, kind: output, shape index: {}]
  %s4 = sld [smem:[#allocation0]]
  $region22: #{conv_bn_act.3} parent=0
    _
  %s6 = ssub.s32 1, %s4
  %s7 = scalar_select 0, %s6, %s4
  // Predicated region
  $region2: #{conv_bn_act.3} parent=0 // pred_check
    _
  $region3: #{conv_bn_act.3} parent=0 // pred_check_branch
    %9 = sbr.rel (0) target = $region5
  $region4: #{conv_bn_act.3} parent=0 // pred_region
    _
  $region5: #{conv_bn_act.3} parent=0 // pred_fallthru
    _
  // Predicated region
  $region6: #{conv_bn_act.3} parent=0 // pred_check
    _
  $region7: #{conv_bn_act.3} parent=0 // pred_check_branch
    %11 = sbr.rel (0) target = $region9
  $region8: #{conv_bn_act.3} parent=0 // pred_region
    _
  $region9: #{conv_bn_act.3} parent=0 // pred_fallthru
    _
  // Predicated region
  $region10: #{conv_bn_act.3} parent=0 // pred_check
    _
  $region11: #{conv_bn_act.3} parent=0 // pred_check_branch
    %13 = sbr.rel (0) target = $region13
  $region12: #{conv_bn_act.3} parent=0 // pred_region
    _
  $region13: #{conv_bn_act.3} parent=0 // pred_fallthru
    _
  %v14 = vld [vmem:[%s0] sm:$0xff]
  %v15 = vld [vmem:[%s0 + $0x8] sm:$0xff]
  %v16 = vld [vmem:[%s0 + $0x10] sm:$0xff]
  %v17 = vld [vmem:[%s0 + $0x18] sm:$0xff]
  %v18 = vld [vmem:[%s0 + $0x20] sm:$0xff]
  %v19 = vld [vmem:[%s0 + $0x28] sm:$0xff]
  %v20 = vld [vmem:[%s0 + $0x30] sm:$0xff]
  %v21 = vld [vmem:[%s0 + $0x38] sm:$0xff]
  %v22 = vld [vmem:[%s0 + $0x40] sm:$0xff]
  %v23 = vld [vmem:[%s0 + $0x48] sm:$0xff]
  %v24 = vld [vmem:[%s0 + $0x50] sm:$0xff]
  %v25 = vld [vmem:[%s0 + $0x58] sm:$0xff]
  %v26 = vld [vmem:[%s0 + $0x60] sm:$0xff]
  %v27 = vld [vmem:[%s0 + $0x68] sm:$0xff]
  %v28 = vld [vmem:[%s0 + $0x70] sm:$0xff]
  %v29 = vld [vmem:[%s0 + $0x78] sm:$0xff]
  %v30 = vld [vmem:[%s0 + $0x80] sm:$0xff]
  %v31 = vld [vmem:[%s0 + $0x88] sm:$0xff]
  %v32 = vld [vmem:[%s0 + $0x90] sm:$0xff]
  %v33 = vld [vmem:[%s0 + $0x98] sm:$0xff]
  %v34 = vld [vmem:[%s0 + $0xa0] sm:$0xff]
  %v35 = vld [vmem:[%s0 + $0xa8] sm:$0xff]
  %v36 = vld [vmem:[%s0 + $0xb0] sm:$0xff]
  %v37 = vld [vmem:[%s0 + $0xb8] sm:$0xff]
  %v38 = vld [vmem:[%s0 + $0xc0] sm:$0xff]
  %v39 = vld [vmem:[%s0 + $0xc8] sm:$0xff]
  %v40 = vld [vmem:[%s0 + $0xd0] sm:$0xff]
  %v41 = vld [vmem:[%s0 + $0xd8] sm:$0xff]
  %v42 = vld [vmem:[%s0 + $0xe0] sm:$0xff]
  %v43 = vld [vmem:[%s0 + $0xe8] sm:$0xff]
  %v44 = vld [vmem:[%s0 + $0xf0] sm:$0xff]
  %v45 = vld [vmem:[%s0 + $0xf8] sm:$0xff]
  %v46 = vld [vmem:[%s0 + $0x100] sm:$0xff]
  %v47 = vld [vmem:[%s0 + $0x108] sm:$0xff]
  %v48 = vld [vmem:[%s0 + $0x110] sm:$0xff]
  %v49 = vld [vmem:[%s0 + $0x118] sm:$0xff]
  %v50 = vld [vmem:[%s0 + $0x120] sm:$0xff]
  %v51 = vld [vmem:[%s0 + $0x128] sm:$0xff]
  %v52 = vld [vmem:[%s0 + $0x130] sm:$0xff]
  %v53 = vld [vmem:[%s0 + $0x138] sm:$0xff]
  %v54 = vld [vmem:[%s0 + $0x140] sm:$0xff]
  %v55 = vld [vmem:[%s0 + $0x148] sm:$0xff]
  %v56 = vld [vmem:[%s0 + $0x150] sm:$0xff]
  %v57 = vld [vmem:[%s0 + $0x158] sm:$0xff]
  %v58 = vld [vmem:[%s0 + $0x160] sm:$0xff]
  %v59 = vld [vmem:[%s0 + $0x168] sm:$0xff]
  %v60 = vld [vmem:[%s0 + $0x170] sm:$0xff]
  %v61 = vld [vmem:[%s0 + $0x178] sm:$0xff]
  %v62 = vld [vmem:[%s0 + $0x180] sm:$0xff]
  %v63 = vld [vmem:[%s0 + $0x188] sm:$0xff]
  %v64 = vld [vmem:[%s0 + $0x190] sm:$0xff]
  %v65 = vld [vmem:[%s0 + $0x198] sm:$0xff]
  %v66 = vld [vmem:[%s0 + $0x1a0] sm:$0xff]
  %v67 = vld [vmem:[%s0 + $0x1a8] sm:$0xff]
  %v68 = vld [vmem:[%s0 + $0x1b0] sm:$0xff]
  %v69 = vld [vmem:[%s0 + $0x1b8] sm:$0xff]
  %v70 = vld [vmem:[%s0 + $0x1c0] sm:$0xff]
  %v71 = vld [vmem:[%s0 + $0x1c8] sm:$0xff]
  %v72 = vld [vmem:[%s0 + $0x1d0] sm:$0xff]
  %v73 = vld [vmem:[%s0 + $0x1d8] sm:$0xff]
  %v74 = vld [vmem:[%s0 + $0x1e0] sm:$0xff]
  %v75 = vld [vmem:[%s0 + $0x1e8] sm:$0xff]
  %v76 = vld [vmem:[%s0 + $0x1f0] sm:$0xff]
  %v77 = vld [vmem:[%s0 + $0x1f8] sm:$0xff]
  %v78 = vld [vmem:[%s1] sm:$0x1]
  %v80 = vlaneseq
  %v81 = vshrl.u32 %v80, 7
  %v82 = vsub.s32 0, %v81
  %v83 = vrot.slane %v78, %v82
  %v85 = vmul.f32 %v14, %v83
  %v86 = vmul.f32 %v15, %v83
  %v87 = vmul.f32 %v16, %v83
  %v88 = vmul.f32 %v17, %v83
  %v89 = vmul.f32 %v18, %v83
  %v90 = vmul.f32 %v19, %v83
  %v91 = vmul.f32 %v20, %v83
  %v92 = vmul.f32 %v21, %v83
  %v93 = vmul.f32 %v22, %v83
  %v94 = vmul.f32 %v23, %v83
  %v95 = vmul.f32 %v24, %v83
  %v96 = vmul.f32 %v25, %v83
  %v97 = vmul.f32 %v26, %v83
  %v98 = vmul.f32 %v27, %v83
  %v99 = vmul.f32 %v28, %v83
  %v100 = vmul.f32 %v29, %v83
  %v101 = vmul.f32 %v30, %v83
  %v102 = vmul.f32 %v31, %v83
  %v103 = vmul.f32 %v32, %v83
  %v104 = vmul.f32 %v33, %v83
  %v105 = vmul.f32 %v34, %v83
  %v106 = vmul.f32 %v35, %v83
  %v107 = vmul.f32 %v36, %v83
  %v108 = vmul.f32 %v37, %v83
  %v109 = vmul.f32 %v38, %v83
  %v110 = vmul.f32 %v39, %v83
  %v111 = vmul.f32 %v40, %v83
  %v112 = vmul.f32 %v41, %v83
  %v113 = vmul.f32 %v42, %v83
  %v114 = vmul.f32 %v43, %v83
  %v115 = vmul.f32 %v44, %v83
  %v116 = vmul.f32 %v45, %v83
  %v117 = vmul.f32 %v46, %v83
  %v118 = vmul.f32 %v47, %v83
  %v119 = vmul.f32 %v48, %v83
  %v120 = vmul.f32 %v49, %v83
  %v121 = vmul.f32 %v50, %v83
  %v122 = vmul.f32 %v51, %v83
  %v123 = vmul.f32 %v52, %v83
  %v124 = vmul.f32 %v53, %v83
  %v125 = vmul.f32 %v54, %v83
  %v126 = vmul.f32 %v55, %v83
  %v127 = vmul.f32 %v56, %v83
  %v128 = vmul.f32 %v57, %v83
  %v129 = vmul.f32 %v58, %v83
  %v130 = vmul.f32 %v59, %v83
  %v131 = vmul.f32 %v60, %v83
  %v132 = vmul.f32 %v61, %v83
  %v133 = vmul.f32 %v62, %v83
  %v134 = vmul.f32 %v63, %v83
  %v135 = vmul.f32 %v64, %v83
  %v136 = vmul.f32 %v65, %v83
  %v137 = vmul.f32 %v66, %v83
  %v138 = vmul.f32 %v67, %v83
  %v139 = vmul.f32 %v68, %v83
  %v140 = vmul.f32 %v69, %v83
  %v141 = vmul.f32 %v70, %v83
  %v142 = vmul.f32 %v71, %v83
  %v143 = vmul.f32 %v72, %v83
  %v144 = vmul.f32 %v73, %v83
  %v145 = vmul.f32 %v74, %v83
  %v146 = vmul.f32 %v75, %v83
  %v147 = vmul.f32 %v76, %v83
  %v148 = vmul.f32 %v77, %v83
  %v149 = vld [vmem:[%s2] sm:$0x1]
  %v151 = vlaneseq
  %v152 = vshrl.u32 %v151, 7
  %v153 = vsub.s32 0, %v152
  %v154 = vrot.slane %v149, %v153
  %v156 = vadd.f32 %v85, %v154
  %v157 = vadd.f32 %v86, %v154
  %v158 = vadd.f32 %v87, %v154
  %v159 = vadd.f32 %v88, %v154
  %v160 = vadd.f32 %v89, %v154
  %v161 = vadd.f32 %v90, %v154
  %v162 = vadd.f32 %v91, %v154
  %v163 = vadd.f32 %v92, %v154
  %v164 = vadd.f32 %v93, %v154
  %v165 = vadd.f32 %v94, %v154
  %v166 = vadd.f32 %v95, %v154
  %v167 = vadd.f32 %v96, %v154
  %v168 = vadd.f32 %v97, %v154
  %v169 = vadd.f32 %v98, %v154
  %v170 = vadd.f32 %v99, %v154
  %v171 = vadd.f32 %v100, %v154
  %v172 = vadd.f32 %v101, %v154
  %v173 = vadd.f32 %v102, %v154
  %v174 = vadd.f32 %v103, %v154
  %v175 = vadd.f32 %v104, %v154
  %v176 = vadd.f32 %v105, %v154
  %v177 = vadd.f32 %v106, %v154
  %v178 = vadd.f32 %v107, %v154
  %v179 = vadd.f32 %v108, %v154
  %v180 = vadd.f32 %v109, %v154
  %v181 = vadd.f32 %v110, %v154
  %v182 = vadd.f32 %v111, %v154
  %v183 = vadd.f32 %v112, %v154
  %v184 = vadd.f32 %v113, %v154
  %v185 = vadd.f32 %v114, %v154
  %v186 = vadd.f32 %v115, %v154
  %v187 = vadd.f32 %v116, %v154
  %v188 = vadd.f32 %v117, %v154
  %v189 = vadd.f32 %v118, %v154
  %v190 = vadd.f32 %v119, %v154
  %v191 = vadd.f32 %v120, %v154
  %v192 = vadd.f32 %v121, %v154
  %v193 = vadd.f32 %v122, %v154
  %v194 = vadd.f32 %v123, %v154
  %v195 = vadd.f32 %v124, %v154
  %v196 = vadd.f32 %v125, %v154
  %v197 = vadd.f32 %v126, %v154
  %v198 = vadd.f32 %v127, %v154
  %v199 = vadd.f32 %v128, %v154
  %v200 = vadd.f32 %v129, %v154
  %v201 = vadd.f32 %v130, %v154
  %v202 = vadd.f32 %v131, %v154
  %v203 = vadd.f32 %v132, %v154
  %v204 = vadd.f32 %v133, %v154
  %v205 = vadd.f32 %v134, %v154
  %v206 = vadd.f32 %v135, %v154
  %v207 = vadd.f32 %v136, %v154
  %v208 = vadd.f32 %v137, %v154
  %v209 = vadd.f32 %v138, %v154
  %v210 = vadd.f32 %v139, %v154
  %v211 = vadd.f32 %v140, %v154
  %v212 = vadd.f32 %v141, %v154
  %v213 = vadd.f32 %v142, %v154
  %v214 = vadd.f32 %v143, %v154
  %v215 = vadd.f32 %v144, %v154
  %v216 = vadd.f32 %v145, %v154
  %v217 = vadd.f32 %v146, %v154
  %v218 = vadd.f32 %v147, %v154
  %v219 = vadd.f32 %v148, %v154
  %v220 = vxor.u32 %v156, 2147483648
  %v221 = vxor.u32 %v157, 2147483648
  %v222 = vxor.u32 %v158, 2147483648
  %v223 = vxor.u32 %v159, 2147483648
  %v224 = vxor.u32 %v160, 2147483648
  %v225 = vxor.u32 %v161, 2147483648
  %v226 = vxor.u32 %v162, 2147483648
  %v227 = vxor.u32 %v163, 2147483648
  %v228 = vxor.u32 %v164, 2147483648
  %v229 = vxor.u32 %v165, 2147483648
  %v230 = vxor.u32 %v166, 2147483648
  %v231 = vxor.u32 %v167, 2147483648
  %v232 = vxor.u32 %v168, 2147483648
  %v233 = vxor.u32 %v169, 2147483648
  %v234 = vxor.u32 %v170, 2147483648
  %v235 = vxor.u32 %v171, 2147483648
  %v236 = vxor.u32 %v172, 2147483648
  %v237 = vxor.u32 %v173, 2147483648
  %v238 = vxor.u32 %v174, 2147483648
  %v239 = vxor.u32 %v175, 2147483648
  %v240 = vxor.u32 %v176, 2147483648
  %v241 = vxor.u32 %v177, 2147483648
  %v242 = vxor.u32 %v178, 2147483648
  %v243 = vxor.u32 %v179, 2147483648
  %v244 = vxor.u32 %v180, 2147483648
  %v245 = vxor.u32 %v181, 2147483648
  %v246 = vxor.u32 %v182, 2147483648
  %v247 = vxor.u32 %v183, 2147483648
  %v248 = vxor.u32 %v184, 2147483648
  %v249 = vxor.u32 %v185, 2147483648
  %v250 = vxor.u32 %v186, 2147483648
  %v251 = vxor.u32 %v187, 2147483648
  %v252 = vxor.u32 %v188, 2147483648
  %v253 = vxor.u32 %v189, 2147483648
  %v254 = vxor.u32 %v190, 2147483648
  %v255 = vxor.u32 %v191, 2147483648
  %v256 = vxor.u32 %v192, 2147483648
  %v257 = vxor.u32 %v193, 2147483648
  %v258 = vxor.u32 %v194, 2147483648
  %v259 = vxor.u32 %v195, 2147483648
  %v260 = vxor.u32 %v196, 2147483648
  %v261 = vxor.u32 %v197, 2147483648
  %v262 = vxor.u32 %v198, 2147483648
  %v263 = vxor.u32 %v199, 2147483648
  %v264 = vxor.u32 %v200, 2147483648
  %v265 = vxor.u32 %v201, 2147483648
  %v266 = vxor.u32 %v202, 2147483648
  %v267 = vxor.u32 %v203, 2147483648
  %v268 = vxor.u32 %v204, 2147483648
  %v269 = vxor.u32 %v205, 2147483648
  %v270 = vxor.u32 %v206, 2147483648
  %v271 = vxor.u32 %v207, 2147483648
  %v272 = vxor.u32 %v208, 2147483648
  %v273 = vxor.u32 %v209, 2147483648
  %v274 = vxor.u32 %v210, 2147483648
  %v275 = vxor.u32 %v211, 2147483648
  %v276 = vxor.u32 %v212, 2147483648
  %v277 = vxor.u32 %v213, 2147483648
  %v278 = vxor.u32 %v214, 2147483648
  %v279 = vxor.u32 %v215, 2147483648
  %v280 = vxor.u32 %v216, 2147483648
  %v281 = vxor.u32 %v217, 2147483648
  %v282 = vxor.u32 %v218, 2147483648
  %v283 = vxor.u32 %v219, 2147483648
  %v284 = vmul.f32 %v220, 1.442695
  %v285 = vpow.pop %v284
  %v286 = vmul.f32 %v221, 1.442695
  %v287 = vpow.pop %v286
  %v288 = vmul.f32 %v222, 1.442695
  %v289 = vpow.pop %v288
  %v290 = vmul.f32 %v223, 1.442695
  %v291 = vpow.pop %v290
  %v292 = vmul.f32 %v224, 1.442695
  %v293 = vpow.pop %v292
  %v294 = vmul.f32 %v225, 1.442695
  %v295 = vpow.pop %v294
  %v296 = vmul.f32 %v226, 1.442695
  %v297 = vpow.pop %v296
  %v298 = vmul.f32 %v227, 1.442695
  %v299 = vpow.pop %v298
  %v300 = vmul.f32 %v228, 1.442695
  %v301 = vpow.pop %v300
  %v302 = vmul.f32 %v229, 1.442695
  %v303 = vpow.pop %v302
  %v304 = vmul.f32 %v230, 1.442695
  %v305 = vpow.pop %v304
  %v306 = vmul.f32 %v231, 1.442695
  %v307 = vpow.pop %v306
  %v308 = vmul.f32 %v232, 1.442695
  %v309 = vpow.pop %v308
  %v310 = vmul.f32 %v233, 1.442695
  %v311 = vpow.pop %v310
  %v312 = vmul.f32 %v234, 1.442695
  %v313 = vpow.pop %v312
  %v314 = vmul.f32 %v235, 1.442695
  %v315 = vpow.pop %v314
  %v316 = vmul.f32 %v236, 1.442695
  %v317 = vpow.pop %v316
  %v318 = vmul.f32 %v237, 1.442695
  %v319 = vpow.pop %v318
  %v320 = vmul.f32 %v238, 1.442695
  %v321 = vpow.pop %v320
  %v322 = vmul.f32 %v239, 1.442695
  %v323 = vpow.pop %v322
  %v324 = vmul.f32 %v240, 1.442695
  %v325 = vpow.pop %v324
  %v326 = vmul.f32 %v241, 1.442695
  %v327 = vpow.pop %v326
  %v328 = vmul.f32 %v242, 1.442695
  %v329 = vpow.pop %v328
  %v330 = vmul.f32 %v243, 1.442695
  %v331 = vpow.pop %v330
  %v332 = vmul.f32 %v244, 1.442695
  %v333 = vpow.pop %v332
  %v334 = vmul.f32 %v245, 1.442695
  %v335 = vpow.pop %v334
  %v336 = vmul.f32 %v246, 1.442695
  %v337 = vpow.pop %v336
  %v338 = vmul.f32 %v247, 1.442695
  %v339 = vpow.pop %v338
  %v340 = vmul.f32 %v248, 1.442695
  %v341 = vpow.pop %v340
  %v342 = vmul.f32 %v249, 1.442695
  %v343 = vpow.pop %v342
  %v344 = vmul.f32 %v250, 1.442695
  %v345 = vpow.pop %v344
  %v346 = vmul.f32 %v251, 1.442695
  %v347 = vpow.pop %v346
  %v348 = vmul.f32 %v252, 1.442695
  %v349 = vpow.pop %v348
  %v350 = vmul.f32 %v253, 1.442695
  %v351 = vpow.pop %v350
  %v352 = vmul.f32 %v254, 1.442695
  %v353 = vpow.pop %v352
  %v354 = vmul.f32 %v255, 1.442695
  %v355 = vpow.pop %v354
  %v356 = vmul.f32 %v256, 1.442695
  %v357 = vpow.pop %v356
  %v358 = vmul.f32 %v257, 1.442695
  %v359 = vpow.pop %v358
  %v360 = vmul.f32 %v258, 1.442695
  %v361 = vpow.pop %v360
  %v362 = vmul.f32 %v259, 1.442695
  %v363 = vpow.pop %v362
  %v364 = vmul.f32 %v260, 1.442695
  %v365 = vpow.pop %v364
  %v366 = vmul.f32 %v261, 1.442695
  %v367 = vpow.pop %v366
  %v368 = vmul.f32 %v262, 1.442695
  %v369 = vpow.pop %v368
  %v370 = vmul.f32 %v263, 1.442695
  %v371 = vpow.pop %v370
  %v372 = vmul.f32 %v264, 1.442695
  %v373 = vpow.pop %v372
  %v374 = vmul.f32 %v265, 1.442695
  %v375 = vpow.pop %v374
  %v376 = vmul.f32 %v266, 1.442695
  %v377 = vpow.pop %v376
  %v378 = vmul.f32 %v267, 1.442695
  %v379 = vpow.pop %v378
  %v380 = vmul.f32 %v268, 1.442695
  %v381 = vpow.pop %v380
  %v382 = vmul.f32 %v269, 1.442695
  %v383 = vpow.pop %v382
  %v384 = vmul.f32 %v270, 1.442695
  %v385 = vpow.pop %v384
  %v386 = vmul.f32 %v271, 1.442695
  %v387 = vpow.pop %v386
  %v388 = vmul.f32 %v272, 1.442695
  %v389 = vpow.pop %v388
  %v390 = vmul.f32 %v273, 1.442695
  %v391 = vpow.pop %v390
  %v392 = vmul.f32 %v274, 1.442695
  %v393 = vpow.pop %v392
  %v394 = vmul.f32 %v275, 1.442695
  %v395 = vpow.pop %v394
  %v396 = vmul.f32 %v276, 1.442695
  %v397 = vpow.pop %v396
  %v398 = vmul.f32 %v277, 1.442695
  %v399 = vpow.pop %v398
  %v400 = vmul.f32 %v278, 1.442695
  %v401 = vpow.pop %v400
  %v402 = vmul.f32 %v279, 1.442695
  %v403 = vpow.pop %v402
  %v404 = vmul.f32 %v280, 1.442695
  %v405 = vpow.pop %v404
  %v406 = vmul.f32 %v281, 1.442695
  %v407 = vpow.pop %v406
  %v408 = vmul.f32 %v282, 1.442695
  %v409 = vpow.pop %v408
  %v410 = vmul.f32 %v283, 1.442695
  %v411 = vpow.pop %v410
  %v412 = vadd.f32 %v285, 1.0
  %v413 = vadd.f32 %v287, 1.0
  %v414 = vadd.f32 %v289, 1.0
  %v415 = vadd.f32 %v291, 1.0
  %v416 = vadd.f32 %v293, 1.0
  %v417 = vadd.f32 %v295, 1.0
  %v418 = vadd.f32 %v297, 1.0
  %v419 = vadd.f32 %v299, 1.0
  %v420 = vadd.f32 %v301, 1.0
  %v421 = vadd.f32 %v303, 1.0
  %v422 = vadd.f32 %v305, 1.0
  %v423 = vadd.f32 %v307, 1.0
  %v424 = vadd.f32 %v309, 1.0
  %v425 = vadd.f32 %v311, 1.0
  %v426 = vadd.f32 %v313, 1.0
  %v427 = vadd.f32 %v315, 1.0
  %v428 = vadd.f32 %v317, 1.0
  %v429 = vadd.f32 %v319, 1.0
  %v430 = vadd.f32 %v321, 1.0
  %v431 = vadd.f32 %v323, 1.0
  %v432 = vadd.f32 %v325, 1.0
  %v433 = vadd.f32 %v327, 1.0
  %v434 = vadd.f32 %v329, 1.0
  %v435 = vadd.f32 %v331, 1.0
  %v436 = vadd.f32 %v333, 1.0
  %v437 = vadd.f32 %v335, 1.0
  %v438 = vadd.f32 %v337, 1.0
  %v439 = vadd.f32 %v339, 1.0
  %v440 = vadd.f32 %v341, 1.0
  %v441 = vadd.f32 %v343, 1.0
  %v442 = vadd.f32 %v345, 1.0
  %v443 = vadd.f32 %v347, 1.0
  %v444 = vadd.f32 %v349, 1.0
  %v445 = vadd.f32 %v351, 1.0
  %v446 = vadd.f32 %v353, 1.0
  %v447 = vadd.f32 %v355, 1.0
  %v448 = vadd.f32 %v357, 1.0
  %v449 = vadd.f32 %v359, 1.0
  %v450 = vadd.f32 %v361, 1.0
  %v451 = vadd.f32 %v363, 1.0
  %v452 = vadd.f32 %v365, 1.0
  %v453 = vadd.f32 %v367, 1.0
  %v454 = vadd.f32 %v369, 1.0
  %v455 = vadd.f32 %v371, 1.0
  %v456 = vadd.f32 %v373, 1.0
  %v457 = vadd.f32 %v375, 1.0
  %v458 = vadd.f32 %v377, 1.0
  %v459 = vadd.f32 %v379, 1.0
  %v460 = vadd.f32 %v381, 1.0
  %v461 = vadd.f32 %v383, 1.0
  %v462 = vadd.f32 %v385, 1.0
  %v463 = vadd.f32 %v387, 1.0
  %v464 = vadd.f32 %v389, 1.0
  %v465 = vadd.f32 %v391, 1.0
  %v466 = vadd.f32 %v393, 1.0
  %v467 = vadd.f32 %v395, 1.0
  %v468 = vadd.f32 %v397, 1.0
  %v469 = vadd.f32 %v399, 1.0
  %v470 = vadd.f32 %v401, 1.0
  %v471 = vadd.f32 %v403, 1.0
  %v472 = vadd.f32 %v405, 1.0
  %v473 = vadd.f32 %v407, 1.0
  %v474 = vadd.f32 %v409, 1.0
  %v475 = vadd.f32 %v411, 1.0
  %v476 = vrcp.pop %v412
  %v477 = vmul.f32 1.0, %v476
  %v478 = vrcp.pop %v413
  %v479 = vmul.f32 1.0, %v478
  %v480 = vrcp.pop %v414
  %v481 = vmul.f32 1.0, %v480
  %v482 = vrcp.pop %v415
  %v483 = vmul.f32 1.0, %v482
  %v484 = vrcp.pop %v416
  %v485 = vmul.f32 1.0, %v484
  %v486 = vrcp.pop %v417
  %v487 = vmul.f32 1.0, %v486
  %v488 = vrcp.pop %v418
  %v489 = vmul.f32 1.0, %v488
  %v490 = vrcp.pop %v419
  %v491 = vmul.f32 1.0, %v490
  %v492 = vrcp.pop %v420
  %v493 = vmul.f32 1.0, %v492
  %v494 = vrcp.pop %v421
  %v495 = vmul.f32 1.0, %v494
  %v496 = vrcp.pop %v422
  %v497 = vmul.f32 1.0, %v496
  %v498 = vrcp.pop %v423
  %v499 = vmul.f32 1.0, %v498
  %v500 = vrcp.pop %v424
  %v501 = vmul.f32 1.0, %v500
  %v502 = vrcp.pop %v425
  %v503 = vmul.f32 1.0, %v502
  %v504 = vrcp.pop %v426
  %v505 = vmul.f32 1.0, %v504
  %v506 = vrcp.pop %v427
  %v507 = vmul.f32 1.0, %v506
  %v508 = vrcp.pop %v428
  %v509 = vmul.f32 1.0, %v508
  %v510 = vrcp.pop %v429
  %v511 = vmul.f32 1.0, %v510
  %v512 = vrcp.pop %v430
  %v513 = vmul.f32 1.0, %v512
  %v514 = vrcp.pop %v431
  %v515 = vmul.f32 1.0, %v514
  %v516 = vrcp.pop %v432
  %v517 = vmul.f32 1.0, %v516
  %v518 = vrcp.pop %v433
  %v519 = vmul.f32 1.0, %v518
  %v520 = vrcp.pop %v434
  %v521 = vmul.f32 1.0, %v520
  %v522 = vrcp.pop %v435
  %v523 = vmul.f32 1.0, %v522
  %v524 = vrcp.pop %v436
  %v525 = vmul.f32 1.0, %v524
  %v526 = vrcp.pop %v437
  %v527 = vmul.f32 1.0, %v526
  %v528 = vrcp.pop %v438
  %v529 = vmul.f32 1.0, %v528
  %v530 = vrcp.pop %v439
  %v531 = vmul.f32 1.0, %v530
  %v532 = vrcp.pop %v440
  %v533 = vmul.f32 1.0, %v532
  %v534 = vrcp.pop %v441
  %v535 = vmul.f32 1.0, %v534
  %v536 = vrcp.pop %v442
  %v537 = vmul.f32 1.0, %v536
  %v538 = vrcp.pop %v443
  %v539 = vmul.f32 1.0, %v538
  %v540 = vrcp.pop %v444
  %v541 = vmul.f32 1.0, %v540
  %v542 = vrcp.pop %v445
  %v543 = vmul.f32 1.0, %v542
  %v544 = vrcp.pop %v446
  %v545 = vmul.f32 1.0, %v544
  %v546 = vrcp.pop %v447
  %v547 = vmul.f32 1.0, %v546
  %v548 = vrcp.pop %v448
  %v549 = vmul.f32 1.0, %v548
  %v550 = vrcp.pop %v449
  %v551 = vmul.f32 1.0, %v550
  %v552 = vrcp.pop %v450
  %v553 = vmul.f32 1.0, %v552
  %v554 = vrcp.pop %v451
  %v555 = vmul.f32 1.0, %v554
  %v556 = vrcp.pop %v452
  %v557 = vmul.f32 1.0, %v556
  %v558 = vrcp.pop %v453
  %v559 = vmul.f32 1.0, %v558
  %v560 = vrcp.pop %v454
  %v561 = vmul.f32 1.0, %v560
  %v562 = vrcp.pop %v455
  %v563 = vmul.f32 1.0, %v562
  %v564 = vrcp.pop %v456
  %v565 = vmul.f32 1.0, %v564
  %v566 = vrcp.pop %v457
  %v567 = vmul.f32 1.0, %v566
  %v568 = vrcp.pop %v458
  %v569 = vmul.f32 1.0, %v568
  %v570 = vrcp.pop %v459
  %v571 = vmul.f32 1.0, %v570
  %v572 = vrcp.pop %v460
  %v573 = vmul.f32 1.0, %v572
  %v574 = vrcp.pop %v461
  %v575 = vmul.f32 1.0, %v574
  %v576 = vrcp.pop %v462
  %v577 = vmul.f32 1.0, %v576
  %v578 = vrcp.pop %v463
  %v579 = vmul.f32 1.0, %v578
  %v580 = vrcp.pop %v464
  %v581 = vmul.f32 1.0, %v580
  %v582 = vrcp.pop %v465
  %v583 = vmul.f32 1.0, %v582
  %v584 = vrcp.pop %v466
  %v585 = vmul.f32 1.0, %v584
  %v586 = vrcp.pop %v467
  %v587 = vmul.f32 1.0, %v586
  %v588 = vrcp.pop %v468
  %v589 = vmul.f32 1.0, %v588
  %v590 = vrcp.pop %v469
  %v591 = vmul.f32 1.0, %v590
  %v592 = vrcp.pop %v470
  %v593 = vmul.f32 1.0, %v592
  %v594 = vrcp.pop %v471
  %v595 = vmul.f32 1.0, %v594
  %v596 = vrcp.pop %v472
  %v597 = vmul.f32 1.0, %v596
  %v598 = vrcp.pop %v473
  %v599 = vmul.f32 1.0, %v598
  %v600 = vrcp.pop %v474
  %v601 = vmul.f32 1.0, %v600
  %v602 = vrcp.pop %v475
  %v603 = vmul.f32 1.0, %v602
  %v604 = vmul.f32 %v156, %v477
  %v605 = vmul.f32 %v157, %v479
  %v606 = vmul.f32 %v158, %v481
  %v607 = vmul.f32 %v159, %v483
  %v608 = vmul.f32 %v160, %v485
  %v609 = vmul.f32 %v161, %v487
  %v610 = vmul.f32 %v162, %v489
  %v611 = vmul.f32 %v163, %v491
  %v612 = vmul.f32 %v164, %v493
  %v613 = vmul.f32 %v165, %v495
  %v614 = vmul.f32 %v166, %v497
  %v615 = vmul.f32 %v167, %v499
  %v616 = vmul.f32 %v168, %v501
  %v617 = vmul.f32 %v169, %v503
  %v618 = vmul.f32 %v170, %v505
  %v619 = vmul.f32 %v171, %v507
  %v620 = vmul.f32 %v172, %v509
  %v621 = vmul.f32 %v173, %v511
  %v622 = vmul.f32 %v174, %v513
  %v623 = vmul.f32 %v175, %v515
  %v624 = vmul.f32 %v176, %v517
  %v625 = vmul.f32 %v177, %v519
  %v626 = vmul.f32 %v178, %v521
  %v627 = vmul.f32 %v179, %v523
  %v628 = vmul.f32 %v180, %v525
  %v629 = vmul.f32 %v181, %v527
  %v630 = vmul.f32 %v182, %v529
  %v631 = vmul.f32 %v183, %v531
  %v632 = vmul.f32 %v184, %v533
  %v633 = vmul.f32 %v185, %v535
  %v634 = vmul.f32 %v186, %v537
  %v635 = vmul.f32 %v187, %v539
  %v636 = vmul.f32 %v188, %v541
  %v637 = vmul.f32 %v189, %v543
  %v638 = vmul.f32 %v190, %v545
  %v639 = vmul.f32 %v191, %v547
  %v640 = vmul.f32 %v192, %v549
  %v641 = vmul.f32 %v193, %v551
  %v642 = vmul.f32 %v194, %v553
  %v643 = vmul.f32 %v195, %v555
  %v644 = vmul.f32 %v196, %v557
  %v645 = vmul.f32 %v197, %v559
  %v646 = vmul.f32 %v198, %v561
  %v647 = vmul.f32 %v199, %v563
  %v648 = vmul.f32 %v200, %v565
  %v649 = vmul.f32 %v201, %v567
  %v650 = vmul.f32 %v202, %v569
  %v651 = vmul.f32 %v203, %v571
  %v652 = vmul.f32 %v204, %v573
  %v653 = vmul.f32 %v205, %v575
  %v654 = vmul.f32 %v206, %v577
  %v655 = vmul.f32 %v207, %v579
  %v656 = vmul.f32 %v208, %v581
  %v657 = vmul.f32 %v209, %v583
  %v658 = vmul.f32 %v210, %v585
  %v659 = vmul.f32 %v211, %v587
  %v660 = vmul.f32 %v212, %v589
  %v661 = vmul.f32 %v213, %v591
  %v662 = vmul.f32 %v214, %v593
  %v663 = vmul.f32 %v215, %v595
  %v664 = vmul.f32 %v216, %v597
  %v665 = vmul.f32 %v217, %v599
  %v666 = vmul.f32 %v218, %v601
  %v667 = vmul.f32 %v219, %v603
  %668 = vst [vmem:[%s3] sm:$0xff] %v604
  %669 = vst [vmem:[%s3 + $0x8] sm:$0xff] %v605
  %670 = vst [vmem:[%s3 + $0x10] sm:$0xff] %v606
  %671 = vst [vmem:[%s3 + $0x18] sm:$0xff] %v607
  %672 = vst [vmem:[%s3 + $0x20] sm:$0xff] %v608
  %673 = vst [vmem:[%s3 + $0x28] sm:$0xff] %v609
  %674 = vst [vmem:[%s3 + $0x30] sm:$0xff] %v610
  %675 = vst [vmem:[%s3 + $0x38] sm:$0xff] %v611
  %676 = vst [vmem:[%s3 + $0x40] sm:$0xff] %v612
  %677 = vst [vmem:[%s3 + $0x48] sm:$0xff] %v613
  %678 = vst [vmem:[%s3 + $0x50] sm:$0xff] %v614
  %679 = vst [vmem:[%s3 + $0x58] sm:$0xff] %v615
  %680 = vst [vmem:[%s3 + $0x60] sm:$0xff] %v616
  %681 = vst [vmem:[%s3 + $0x68] sm:$0xff] %v617
  %682 = vst [vmem:[%s3 + $0x70] sm:$0xff] %v618
  %683 = vst [vmem:[%s3 + $0x78] sm:$0xff] %v619
  %684 = vst [vmem:[%s3 + $0x80] sm:$0xff] %v620
  %685 = vst [vmem:[%s3 + $0x88] sm:$0xff] %v621
  %686 = vst [vmem:[%s3 + $0x90] sm:$0xff] %v622
  %687 = vst [vmem:[%s3 + $0x98] sm:$0xff] %v623
  %688 = vst [vmem:[%s3 + $0xa0] sm:$0xff] %v624
  %689 = vst [vmem:[%s3 + $0xa8] sm:$0xff] %v625
  %690 = vst [vmem:[%s3 + $0xb0] sm:$0xff] %v626
  %691 = vst [vmem:[%s3 + $0xb8] sm:$0xff] %v627
  %692 = vst [vmem:[%s3 + $0xc0] sm:$0xff] %v628
  %693 = vst [vmem:[%s3 + $0xc8] sm:$0xff] %v629
  %694 = vst [vmem:[%s3 + $0xd0] sm:$0xff] %v630
  %695 = vst [vmem:[%s3 + $0xd8] sm:$0xff] %v631
  %696 = vst [vmem:[%s3 + $0xe0] sm:$0xff] %v632
  %697 = vst [vmem:[%s3 + $0xe8] sm:$0xff] %v633
  %698 = vst [vmem:[%s3 + $0xf0] sm:$0xff] %v634
  %699 = vst [vmem:[%s3 + $0xf8] sm:$0xff] %v635
  %700 = vst [vmem:[%s3 + $0x100] sm:$0xff] %v636
  %701 = vst [vmem:[%s3 + $0x108] sm:$0xff] %v637
  %702 = vst [vmem:[%s3 + $0x110] sm:$0xff] %v638
  %703 = vst [vmem:[%s3 + $0x118] sm:$0xff] %v639
  %704 = vst [vmem:[%s3 + $0x120] sm:$0xff] %v640
  %705 = vst [vmem:[%s3 + $0x128] sm:$0xff] %v641
  %706 = vst [vmem:[%s3 + $0x130] sm:$0xff] %v642
  %707 = vst [vmem:[%s3 + $0x138] sm:$0xff] %v643
  %708 = vst [vmem:[%s3 + $0x140] sm:$0xff] %v644
  %709 = vst [vmem:[%s3 + $0x148] sm:$0xff] %v645
  %710 = vst [vmem:[%s3 + $0x150] sm:$0xff] %v646
  %711 = vst [vmem:[%s3 + $0x158] sm:$0xff] %v647
  %712 = vst [vmem:[%s3 + $0x160] sm:$0xff] %v648
  %713 = vst [vmem:[%s3 + $0x168] sm:$0xff] %v649
  %714 = vst [vmem:[%s3 + $0x170] sm:$0xff] %v650
  %715 = vst [vmem:[%s3 + $0x178] sm:$0xff] %v651
  %716 = vst [vmem:[%s3 + $0x180] sm:$0xff] %v652
  %717 = vst [vmem:[%s3 + $0x188] sm:$0xff] %v653
  %718 = vst [vmem:[%s3 + $0x190] sm:$0xff] %v654
  %719 = vst [vmem:[%s3 + $0x198] sm:$0xff] %v655
  %720 = vst [vmem:[%s3 + $0x1a0] sm:$0xff] %v656
  %721 = vst [vmem:[%s3 + $0x1a8] sm:$0xff] %v657
  %722 = vst [vmem:[%s3 + $0x1b0] sm:$0xff] %v658
  %723 = vst [vmem:[%s3 + $0x1b8] sm:$0xff] %v659
  %724 = vst [vmem:[%s3 + $0x1c0] sm:$0xff] %v660
  %725 = vst [vmem:[%s3 + $0x1c8] sm:$0xff] %v661
  %726 = vst [vmem:[%s3 + $0x1d0] sm:$0xff] %v662
  %727 = vst [vmem:[%s3 + $0x1d8] sm:$0xff] %v663
  %728 = vst [vmem:[%s3 + $0x1e0] sm:$0xff] %v664
  %729 = vst [vmem:[%s3 + $0x1e8] sm:$0xff] %v665
  %730 = vst [vmem:[%s3 + $0x1f0] sm:$0xff] %v666
  %731 = vst [vmem:[%s3 + $0x1f8] sm:$0xff] %v667
  // Predicated region
  $region14: #{conv_bn_act.3} parent=0 // pred_check
    _
  $region15: #{conv_bn_act.3} parent=0 // pred_check_branch
    %733 = sbr.rel (0) target = $region17
  $region16: #{conv_bn_act.3} parent=0 // pred_region
    _
  $region17: #{conv_bn_act.3} parent=0 // pred_fallthru
    _
  // Predicated region
  $region18: #{conv_bn_act.3} parent=0 // pred_check
    _
  $region19: #{conv_bn_act.3} parent=0 // pred_check_branch
    %735 = sbr.rel (0) target = $region21
  $region20: #{conv_bn_act.3} parent=0 // pred_region
    _
  $region21: #{conv_bn_act.3} parent=0 // pred_fallthru
    _

// kernel: conv_bn_act.2
$region0: #{conv_bn_act.2}
  #allocation0 [shape = 'u32[]', space=smem, size = 0x4, offset = 0x4, fixed_abs, tag = 'smem constant byte address 0x4 - core index']
  #allocation1 [shape = 'u32[144,128]{1,0:T(1,128)}', space=vmem, size = 0x12000, scoped, tag = 'internal scratch']
  #allocation2 [shape = 'f32[512,128]{1,0:T(8,128)}', space=vmem, size = 0x40000, scoped, tag = 'scratch operand']
  %s0 = inlined_call_operand.vmem [shape: bf16[512,128], index: 0, kind: input, shape index: {}]
  %s1 = inlined_call_operand.vmem [shape: bf16[128,128], index: 1, kind: input, shape index: {}]
  %s2 = inlined_call_operand.vmem [shape: f32[512,128], index: 2, kind: output, shape index: {0}]
  %s3 = inlined_call_operand.vmem [shape: f32[1,1,128], index: 3, kind: output, shape index: {1}]
  %s4 = inlined_call_operand.vmem [shape: f32[1,1,128], index: 4, kind: output, shape index: {2}]
  %5 = xla_tuple %s2, %s3, %s4
  %s6 = sld [smem:[#allocation0]]
  $region42: #{conv_bn_act.2} parent=0
    _
  %s8 = ssub.s32 1, %s6
  %s9 = scalar_select 0, %s8, %s6
  // Predicated region
  $region2: #{conv_bn_act.2} parent=0 // pred_check
    _
  $region3: #{conv_bn_act.2} parent=0 // pred_check_branch
    %11 = sbr.rel (0) target = $region5
  $region4: #{conv_bn_act.2} parent=0 // pred_region
    _
  $region5: #{conv_bn_act.2} parent=0 // pred_fallthru
    _
  // Predicated region
  $region6: #{conv_bn_act.2} parent=0 // pred_check
    _
  $region7: #{conv_bn_act.2} parent=0 // pred_check_branch
    %13 = sbr.rel (0) target = $region9
  $region8: #{conv_bn_act.2} parent=0 // pred_region
    _
  $region9: #{conv_bn_act.2} parent=0 // pred_fallthru
    _
  %p15 = scmp.eq.s32.totalorder 0, 0
  // Predicated region
  $region10: #{conv_bn_act.2} parent=0 // pred_check
    %p16 = pneg %p15
  $region11: #{conv_bn_act.2} parent=0 // pred_check_branch
    %18 = sbr.rel (%p16) target = $region13
  $region12: #{conv_bn_act.2} parent=0 // pred_region
    %19 = vst [vmem:[#allocation2] sm:$0xff] 0.0
    %20 = vst [vmem:[#allocation2 + $0x8] sm:$0xff] 0.0
    %21 = vst [vmem:[#allocation2 + $0x10] sm:$0xff] 0.0
    %22 = vst [vmem:[#allocation2 + $0x18] sm:$0xff] 0.0
    %23 = vst [vmem:[#allocation2 + $0x20] sm:$0xff] 0.0
    %24 = vst [vmem:[#allocation2 + $0x28] sm:$0xff] 0.0
    %25 = vst [vmem:[#allocation2 + $0x30] sm:$0xff] 0.0
    %26 = vst [vmem:[#allocation2 + $0x38] sm:$0xff] 0.0
    %27 = vst [vmem:[#allocation2 + $0x40] sm:$0xff] 0.0
    %28 = vst [vmem:[#allocation2 + $0x48] sm:$0xff] 0.0
    %29 = vst [vmem:[#allocation2 + $0x50] sm:$0xff] 0.0
    %30 = vst [vmem:[#allocation2 + $0x58] sm:$0xff] 0.0
    %31 = vst [vmem:[#allocation2 + $0x60] sm:$0xff] 0.0
    %32 = vst [vmem:[#allocation2 + $0x68] sm:$0xff] 0.0
    %33 = vst [vmem:[#allocation2 + $0x70] sm:$0xff] 0.0
    %34 = vst [vmem:[#allocation2 + $0x78] sm:$0xff] 0.0
    %35 = vst [vmem:[#allocation2 + $0x80] sm:$0xff] 0.0
    %36 = vst [vmem:[#allocation2 + $0x88] sm:$0xff] 0.0
    %37 = vst [vmem:[#allocation2 + $0x90] sm:$0xff] 0.0
    %38 = vst [vmem:[#allocation2 + $0x98] sm:$0xff] 0.0
    %39 = vst [vmem:[#allocation2 + $0xa0] sm:$0xff] 0.0
    %40 = vst [vmem:[#allocation2 + $0xa8] sm:$0xff] 0.0
    %41 = vst [vmem:[#allocation2 + $0xb0] sm:$0xff] 0.0
    %42 = vst [vmem:[#allocation2 + $0xb8] sm:$0xff] 0.0
    %43 = vst [vmem:[#allocation2 + $0xc0] sm:$0xff] 0.0
    %44 = vst [vmem:[#allocation2 + $0xc8] sm:$0xff] 0.0
    %45 = vst [vmem:[#allocation2 + $0xd0] sm:$0xff] 0.0
    %46 = vst [vmem:[#allocation2 + $0xd8] sm:$0xff] 0.0
    %47 = vst [vmem:[#allocation2 + $0xe0] sm:$0xff] 0.0
    %48 = vst [vmem:[#allocation2 + $0xe8] sm:$0xff] 0.0
    %49 = vst [vmem:[#allocation2 + $0xf0] sm:$0xff] 0.0
    %50 = vst [vmem:[#allocation2 + $0xf8] sm:$0xff] 0.0
    %51 = vst [vmem:[#allocation2 + $0x100] sm:$0xff] 0.0
    %52 = vst [vmem:[#allocation2 + $0x108] sm:$0xff] 0.0
    %53 = vst [vmem:[#allocation2 + $0x110] sm:$0xff] 0.0
    %54 = vst [vmem:[#allocation2 + $0x118] sm:$0xff] 0.0
    %55 = vst [vmem:[#allocation2 + $0x120] sm:$0xff] 0.0
    %56 = vst [vmem:[#allocation2 + $0x128] sm:$0xff] 0.0
    %57 = vst [vmem:[#allocation2 + $0x130] sm:$0xff] 0.0
    %58 = vst [vmem:[#allocation2 + $0x138] sm:$0xff] 0.0
    %59 = vst [vmem:[#allocation2 + $0x140] sm:$0xff] 0.0
    %60 = vst [vmem:[#allocation2 + $0x148] sm:$0xff] 0.0
    %61 = vst [vmem:[#allocation2 + $0x150] sm:$0xff] 0.0
    %62 = vst [vmem:[#allocation2 + $0x158] sm:$0xff] 0.0
    %63 = vst [vmem:[#allocation2 + $0x160] sm:$0xff] 0.0
    %64 = vst [vmem:[#allocation2 + $0x168] sm:$0xff] 0.0
    %65 = vst [vmem:[#allocation2 + $0x170] sm:$0xff] 0.0
    %66 = vst [vmem:[#allocation2 + $0x178] sm:$0xff] 0.0
    %67 = vst [vmem:[#allocation2 + $0x180] sm:$0xff] 0.0
    %68 = vst [vmem:[#allocation2 + $0x188] sm:$0xff] 0.0
    %69 = vst [vmem:[#allocation2 + $0x190] sm:$0xff] 0.0
    %70 = vst [vmem:[#allocation2 + $0x198] sm:$0xff] 0.0
    %71 = vst [vmem:[#allocation2 + $0x1a0] sm:$0xff] 0.0
    %72 = vst [vmem:[#allocation2 + $0x1a8] sm:$0xff] 0.0
    %73 = vst [vmem:[#allocation2 + $0x1b0] sm:$0xff] 0.0
    %74 = vst [vmem:[#allocation2 + $0x1b8] sm:$0xff] 0.0
    %75 = vst [vmem:[#allocation2 + $0x1c0] sm:$0xff] 0.0
    %76 = vst [vmem:[#allocation2 + $0x1c8] sm:$0xff] 0.0
    %77 = vst [vmem:[#allocation2 + $0x1d0] sm:$0xff] 0.0
    %78 = vst [vmem:[#allocation2 + $0x1d8] sm:$0xff] 0.0
    %79 = vst [vmem:[#allocation2 + $0x1e0] sm:$0xff] 0.0
    %80 = vst [vmem:[#allocation2 + $0x1e8] sm:$0xff] 0.0
    %81 = vst [vmem:[#allocation2 + $0x1f0] sm:$0xff] 0.0
    %82 = vst [vmem:[#allocation2 + $0x1f8] sm:$0xff] 0.0
  $region13: #{conv_bn_act.2} parent=0 // pred_fallthru
    _
  %v83 = vld [vmem:[#allocation2] sm:$0xff]
  %v84 = vld [vmem:[#allocation2 + $0x8] sm:$0xff]
  %v85 = vld [vmem:[#allocation2 + $0x10] sm:$0xff]
  %v86 = vld [vmem:[#allocation2 + $0x18] sm:$0xff]
  %v87 = vld [vmem:[#allocation2 + $0x20] sm:$0xff]
  %v88 = vld [vmem:[#allocation2 + $0x28] sm:$0xff]
  %v89 = vld [vmem:[#allocation2 + $0x30] sm:$0xff]
  %v90 = vld [vmem:[#allocation2 + $0x38] sm:$0xff]
  %v91 = vld [vmem:[#allocation2 + $0x40] sm:$0xff]
  %v92 = vld [vmem:[#allocation2 + $0x48] sm:$0xff]
  %v93 = vld [vmem:[#allocation2 + $0x50] sm:$0xff]
  %v94 = vld [vmem:[#allocation2 + $0x58] sm:$0xff]
  %v95 = vld [vmem:[#allocation2 + $0x60] sm:$0xff]
  %v96 = vld [vmem:[#allocation2 + $0x68] sm:$0xff]
  %v97 = vld [vmem:[#allocation2 + $0x70] sm:$0xff]
  %v98 = vld [vmem:[#allocation2 + $0x78] sm:$0xff]
  %v99 = vld [vmem:[#allocation2 + $0x80] sm:$0xff]
  %v100 = vld [vmem:[#allocation2 + $0x88] sm:$0xff]
  %v101 = vld [vmem:[#allocation2 + $0x90] sm:$0xff]
  %v102 = vld [vmem:[#allocation2 + $0x98] sm:$0xff]
  %v103 = vld [vmem:[#allocation2 + $0xa0] sm:$0xff]
  %v104 = vld [vmem:[#allocation2 + $0xa8] sm:$0xff]
  %v105 = vld [vmem:[#allocation2 + $0xb0] sm:$0xff]
  %v106 = vld [vmem:[#allocation2 + $0xb8] sm:$0xff]
  %v107 = vld [vmem:[#allocation2 + $0xc0] sm:$0xff]
  %v108 = vld [vmem:[#allocation2 + $0xc8] sm:$0xff]
  %v109 = vld [vmem:[#allocation2 + $0xd0] sm:$0xff]
  %v110 = vld [vmem:[#allocation2 + $0xd8] sm:$0xff]
  %v111 = vld [vmem:[#allocation2 + $0xe0] sm:$0xff]
  %v112 = vld [vmem:[#allocation2 + $0xe8] sm:$0xff]
  %v113 = vld [vmem:[#allocation2 + $0xf0] sm:$0xff]
  %v114 = vld [vmem:[#allocation2 + $0xf8] sm:$0xff]
  %v115 = vld [vmem:[#allocation2 + $0x100] sm:$0xff]
  %v116 = vld [vmem:[#allocation2 + $0x108] sm:$0xff]
  %v117 = vld [vmem:[#allocation2 + $0x110] sm:$0xff]
  %v118 = vld [vmem:[#allocation2 + $0x118] sm:$0xff]
  %v119 = vld [vmem:[#allocation2 + $0x120] sm:$0xff]
  %v120 = vld [vmem:[#allocation2 + $0x128] sm:$0xff]
  %v121 = vld [vmem:[#allocation2 + $0x130] sm:$0xff]
  %v122 = vld [vmem:[#allocation2 + $0x138] sm:$0xff]
  %v123 = vld [vmem:[#allocation2 + $0x140] sm:$0xff]
  %v124 = vld [vmem:[#allocation2 + $0x148] sm:$0xff]
  %v125 = vld [vmem:[#allocation2 + $0x150] sm:$0xff]
  %v126 = vld [vmem:[#allocation2 + $0x158] sm:$0xff]
  %v127 = vld [vmem:[#allocation2 + $0x160] sm:$0xff]
  %v128 = vld [vmem:[#allocation2 + $0x168] sm:$0xff]
  %v129 = vld [vmem:[#allocation2 + $0x170] sm:$0xff]
  %v130 = vld [vmem:[#allocation2 + $0x178] sm:$0xff]
  %v131 = vld [vmem:[#allocation2 + $0x180] sm:$0xff]
  %v132 = vld [vmem:[#allocation2 + $0x188] sm:$0xff]
  %v133 = vld [vmem:[#allocation2 + $0x190] sm:$0xff]
  %v134 = vld [vmem:[#allocation2 + $0x198] sm:$0xff]
  %v135 = vld [vmem:[#allocation2 + $0x1a0] sm:$0xff]
  %v136 = vld [vmem:[#allocation2 + $0x1a8] sm:$0xff]
  %v137 = vld [vmem:[#allocation2 + $0x1b0] sm:$0xff]
  %v138 = vld [vmem:[#allocation2 + $0x1b8] sm:$0xff]
  %v139 = vld [vmem:[#allocation2 + $0x1c0] sm:$0xff]
  %v140 = vld [vmem:[#allocation2 + $0x1c8] sm:$0xff]
  %v141 = vld [vmem:[#allocation2 + $0x1d0] sm:$0xff]
  %v142 = vld [vmem:[#allocation2 + $0x1d8] sm:$0xff]
  %v143 = vld [vmem:[#allocation2 + $0x1e0] sm:$0xff]
  %v144 = vld [vmem:[#allocation2 + $0x1e8] sm:$0xff]
  %v145 = vld [vmem:[#allocation2 + $0x1f0] sm:$0xff]
  %v146 = vld [vmem:[#allocation2 + $0x1f8] sm:$0xff]
  %v147 = vld [vmem:[%s0] sm:$0xf]
  %v148 = vld [vmem:[%s0 + $0x4] sm:$0xf]
  %v149 = vld [vmem:[%s0 + $0x8] sm:$0xf]
  %v150 = vld [vmem:[%s0 + $0xc] sm:$0xf]
  %v151 = vld [vmem:[%s0 + $0x10] sm:$0xf]
  %v152 = vld [vmem:[%s0 + $0x14] sm:$0xf]
  %v153 = vld [vmem:[%s0 + $0x18] sm:$0xf]
  %v154 = vld [vmem:[%s0 + $0x1c] sm:$0xf]
  %v155 = vld [vmem:[%s0 + $0x20] sm:$0xf]
  %v156 = vld [vmem:[%s0 + $0x24] sm:$0xf]
  %v157 = vld [vmem:[%s0 + $0x28] sm:$0xf]
  %v158 = vld [vmem:[%s0 + $0x2c] sm:$0xf]
  %v159 = vld [vmem:[%s0 + $0x30] sm:$0xf]
  %v160 = vld [vmem:[%s0 + $0x34] sm:$0xf]
  %v161 = vld [vmem:[%s0 + $0x38] sm:$0xf]
  %v162 = vld [vmem:[%s0 + $0x3c] sm:$0xf]
  %v163 = vld [vmem:[%s0 + $0x40] sm:$0xf]
  %v164 = vld [vmem:[%s0 + $0x44] sm:$0xf]
  %v165 = vld [vmem:[%s0 + $0x48] sm:$0xf]
  %v166 = vld [vmem:[%s0 + $0x4c] sm:$0xf]
  %v167 = vld [vmem:[%s0 + $0x50] sm:$0xf]
  %v168 = vld [vmem:[%s0 + $0x54] sm:$0xf]
  %v169 = vld [vmem:[%s0 + $0x58] sm:$0xf]
  %v170 = vld [vmem:[%s0 + $0x5c] sm:$0xf]
  %v171 = vld [vmem:[%s0 + $0x60] sm:$0xf]
  %v172 = vld [vmem:[%s0 + $0x64] sm:$0xf]
  %v173 = vld [vmem:[%s0 + $0x68] sm:$0xf]
  %v174 = vld [vmem:[%s0 + $0x6c] sm:$0xf]
  %v175 = vld [vmem:[%s0 + $0x70] sm:$0xf]
  %v176 = vld [vmem:[%s0 + $0x74] sm:$0xf]
  %v177 = vld [vmem:[%s0 + $0x78] sm:$0xf]
  %v178 = vld [vmem:[%s0 + $0x7c] sm:$0xf]
  %v179 = vld [vmem:[%s0 + $0x80] sm:$0xf]
  %v180 = vld [vmem:[%s0 + $0x84] sm:$0xf]
  %v181 = vld [vmem:[%s0 + $0x88] sm:$0xf]
  %v182 = vld [vmem:[%s0 + $0x8c] sm:$0xf]
  %v183 = vld [vmem:[%s0 + $0x90] sm:$0xf]
  %v184 = vld [vmem:[%s0 + $0x94] sm:$0xf]
  %v185 = vld [vmem:[%s0 + $0x98] sm:$0xf]
  %v186 = vld [vmem:[%s0 + $0x9c] sm:$0xf]
  %v187 = vld [vmem:[%s0 + $0xa0] sm:$0xf]
  %v188 = vld [vmem:[%s0 + $0xa4] sm:$0xf]
  %v189 = vld [vmem:[%s0 + $0xa8] sm:$0xf]
  %v190 = vld [vmem:[%s0 + $0xac] sm:$0xf]
  %v191 = vld [vmem:[%s0 + $0xb0] sm:$0xf]
  %v192 = vld [vmem:[%s0 + $0xb4] sm:$0xf]
  %v193 = vld [vmem:[%s0 + $0xb8] sm:$0xf]
  %v194 = vld [vmem:[%s0 + $0xbc] sm:$0xf]
  %v195 = vld [vmem:[%s0 + $0xc0] sm:$0xf]
  %v196 = vld [vmem:[%s0 + $0xc4] sm:$0xf]
  %v197 = vld [vmem:[%s0 + $0xc8] sm:$0xf]
  %v198 = vld [vmem:[%s0 + $0xcc] sm:$0xf]
  %v199 = vld [vmem:[%s0 + $0xd0] sm:$0xf]
  %v200 = vld [vmem:[%s0 + $0xd4] sm:$0xf]
  %v201 = vld [vmem:[%s0 + $0xd8] sm:$0xf]
  %v202 = vld [vmem:[%s0 + $0xdc] sm:$0xf]
  %v203 = vld [vmem:[%s0 + $0xe0] sm:$0xf]
  %v204 = vld [vmem:[%s0 + $0xe4] sm:$0xf]
  %v205 = vld [vmem:[%s0 + $0xe8] sm:$0xf]
  %v206 = vld [vmem:[%s0 + $0xec] sm:$0xf]
  %v207 = vld [vmem:[%s0 + $0xf0] sm:$0xf]
  %v208 = vld [vmem:[%s0 + $0xf4] sm:$0xf]
  %v209 = vld [vmem:[%s0 + $0xf8] sm:$0xf]
  %v210 = vld [vmem:[%s0 + $0xfc] sm:$0xf]
  %v211 = vld [vmem:[%s1] sm:$0xf]
  %v212 = vld [vmem:[%s1 + $0x4] sm:$0xf]
  %v213 = vld [vmem:[%s1 + $0x8] sm:$0xf]
  %v214 = vld [vmem:[%s1 + $0xc] sm:$0xf]
  %v215 = vld [vmem:[%s1 + $0x10] sm:$0xf]
  %v216 = vld [vmem:[%s1 + $0x14] sm:$0xf]
  %v217 = vld [vmem:[%s1 + $0x18] sm:$0xf]
  %v218 = vld [vmem:[%s1 + $0x1c] sm:$0xf]
  %v219 = vld [vmem:[%s1 + $0x20] sm:$0xf]
  %v220 = vld [vmem:[%s1 + $0x24] sm:$0xf]
  %v221 = vld [vmem:[%s1 + $0x28] sm:$0xf]
  %v222 = vld [vmem:[%s1 + $0x2c] sm:$0xf]
  %v223 = vld [vmem:[%s1 + $0x30] sm:$0xf]
  %v224 = vld [vmem:[%s1 + $0x34] sm:$0xf]
  %v225 = vld [vmem:[%s1 + $0x38] sm:$0xf]
  %v226 = vld [vmem:[%s1 + $0x3c] sm:$0xf]
  %v291 = vunpack.c.l.b16 %v147
  %v292 = vunpack.c.l.b16 %v148
  %v293 = vunpack.c.l.b16 %v149
  %v294 = vunpack.c.l.b16 %v150
  %v295 = vunpack.c.l.b16 %v151
  %v296 = vunpack.c.l.b16 %v152
  %v297 = vunpack.c.l.b16 %v153
  %v298 = vunpack.c.l.b16 %v154
  %v299 = vunpack.c.l.b16 %v155
  %v300 = vunpack.c.l.b16 %v156
  %v301 = vunpack.c.l.b16 %v157
  %v302 = vunpack.c.l.b16 %v158
  %v303 = vunpack.c.l.b16 %v159
  %v304 = vunpack.c.l.b16 %v160
  %v305 = vunpack.c.l.b16 %v161
  %v306 = vunpack.c.l.b16 %v162
  %v307 = vunpack.c.l.b16 %v163
  %v308 = vunpack.c.l.b16 %v164
  %v309 = vunpack.c.l.b16 %v165
  %v310 = vunpack.c.l.b16 %v166
  %v311 = vunpack.c.l.b16 %v167
  %v312 = vunpack.c.l.b16 %v168
  %v313 = vunpack.c.l.b16 %v169
  %v314 = vunpack.c.l.b16 %v170
  %v315 = vunpack.c.l.b16 %v171
  %v316 = vunpack.c.l.b16 %v172
  %v317 = vunpack.c.l.b16 %v173
  %v318 = vunpack.c.l.b16 %v174
  %v319 = vunpack.c.l.b16 %v175
  %v320 = vunpack.c.l.b16 %v176
  %v321 = vunpack.c.l.b16 %v177
  %v322 = vunpack.c.l.b16 %v178
  %v323 = vunpack.c.l.b16 %v179
  %v324 = vunpack.c.l.b16 %v180
  %v325 = vunpack.c.l.b16 %v181
  %v326 = vunpack.c.l.b16 %v182
  %v327 = vunpack.c.l.b16 %v183
  %v328 = vunpack.c.l.b16 %v184
  %v329 = vunpack.c.l.b16 %v185
  %v330 = vunpack.c.l.b16 %v186
  %v331 = vunpack.c.l.b16 %v187
  %v332 = vunpack.c.l.b16 %v188
  %v333 = vunpack.c.l.b16 %v189
  %v334 = vunpack.c.l.b16 %v190
  %v335 = vunpack.c.l.b16 %v191
  %v336 = vunpack.c.l.b16 %v192
  %v337 = vunpack.c.l.b16 %v193
  %v338 = vunpack.c.l.b16 %v194
  %v339 = vunpack.c.l.b16 %v195
  %v340 = vunpack.c.l.b16 %v196
  %v341 = vunpack.c.l.b16 %v197
  %v342 = vunpack.c.l.b16 %v198
  %v343 = vunpack.c.l.b16 %v199
  %v344 = vunpack.c.l.b16 %v200
  %v345 = vunpack.c.l.b16 %v201
  %v346 = vunpack.c.l.b16 %v202
  %v347 = vunpack.c.l.b16 %v203
  %v348 = vunpack.c.l.b16 %v204
  %v349 = vunpack.c.l.b16 %v205
  %v350 = vunpack.c.l.b16 %v206
  %v351 = vunpack.c.l.b16 %v207
  %v352 = vunpack.c.l.b16 %v208
  %v353 = vunpack.c.l.b16 %v209
  %v354 = vunpack.c.l.b16 %v210
  %v355 = vpack.c.b16 %v292, %v291
  %v356 = vpack.c.b16 %v294, %v293
  %v357 = vpack.c.b16 %v296, %v295
  %v358 = vpack.c.b16 %v298, %v297
  %v359 = vpack.c.b16 %v300, %v299
  %v360 = vpack.c.b16 %v302, %v301
  %v361 = vpack.c.b16 %v304, %v303
  %v362 = vpack.c.b16 %v306, %v305
  %v363 = vpack.c.b16 %v308, %v307
  %v364 = vpack.c.b16 %v310, %v309
  %v365 = vpack.c.b16 %v312, %v311
  %v366 = vpack.c.b16 %v314, %v313
  %v367 = vpack.c.b16 %v316, %v315
  %v368 = vpack.c.b16 %v318, %v317
  %v369 = vpack.c.b16 %v320, %v319
  %v370 = vpack.c.b16 %v322, %v321
  %v371 = vpack.c.b16 %v324, %v323
  %v372 = vpack.c.b16 %v326, %v325
  %v373 = vpack.c.b16 %v328, %v327
  %v374 = vpack.c.b16 %v330, %v329
  %v375 = vpack.c.b16 %v332, %v331
  %v376 = vpack.c.b16 %v334, %v333
  %v377 = vpack.c.b16 %v336, %v335
  %v378 = vpack.c.b16 %v338, %v337
  %v379 = vpack.c.b16 %v340, %v339
  %v380 = vpack.c.b16 %v342, %v341
  %v381 = vpack.c.b16 %v344, %v343
  %v382 = vpack.c.b16 %v346, %v345
  %v383 = vpack.c.b16 %v348, %v347
  %v384 = vpack.c.b16 %v350, %v349
  %v385 = vpack.c.b16 %v352, %v351
  %v386 = vpack.c.b16 %v354, %v353
  %v435 = vunpack.c.l.b16 %v211
  %v436 = vunpack.c.l.b16 %v212
  %v437 = vunpack.c.l.b16 %v213
  %v438 = vunpack.c.l.b16 %v214
  %v439 = vunpack.c.l.b16 %v215
  %v440 = vunpack.c.l.b16 %v216
  %v441 = vunpack.c.l.b16 %v217
  %v442 = vunpack.c.l.b16 %v218
  %v443 = vunpack.c.l.b16 %v219
  %v444 = vunpack.c.l.b16 %v220
  %v445 = vunpack.c.l.b16 %v221
  %v446 = vunpack.c.l.b16 %v222
  %v447 = vunpack.c.l.b16 %v223
  %v448 = vunpack.c.l.b16 %v224
  %v449 = vunpack.c.l.b16 %v225
  %v450 = vunpack.c.l.b16 %v226
  %v451 = vpack.c.b16 %v436, %v435
  %v452 = vpack.c.b16 %v438, %v437
  %v453 = vpack.c.b16 %v440, %v439
  %v454 = vpack.c.b16 %v442, %v441
  %v455 = vpack.c.b16 %v444, %v443
  %v456 = vpack.c.b16 %v446, %v445
  %v457 = vpack.c.b16 %v448, %v447
  %v458 = vpack.c.b16 %v450, %v449
  %467 = vmatprep.subr.bf16.mxu0 0
  %468 = vmatpush1.bf16.msra.mxu0 %v458
  %469 = vmatprep.subr.bf16.mxu0 0
  %470 = vmatpush1.bf16.msra.mxu0 %v457
  %471 = vmatprep.subr.bf16.mxu0 0
  %472 = vmatpush1.bf16.msra.mxu0 %v456
  %473 = vmatprep.subr.bf16.mxu0 0
  %474 = vmatpush1.bf16.msra.mxu0 %v455
  %475 = vmatprep.subr.bf16.mxu0 0
  %476 = vmatpush1.bf16.msra.mxu0 %v454
  %477 = vmatprep.subr.bf16.mxu0 0
  %478 = vmatpush1.bf16.msra.mxu0 %v453
  %479 = vmatprep.subr.bf16.mxu0 0
  %480 = vmatpush1.bf16.msra.mxu0 %v452
  %481 = vmatprep.subr.bf16.mxu0 0
  %482 = vmatpush1.bf16.msra.mxu0 %v451
  %483 = vmatprep.subr.bf16.mxu0 0
  %484 = vmatpush2.bf16.msra.mxu0 0
  %485 = vmatprep.subr.bf16.mxu0 0
  %486 = vmatpush2.bf16.msra.mxu0 0
  %487 = vmatprep.subr.bf16.mxu0 0
  %488 = vmatpush2.bf16.msra.mxu0 0
  %489 = vmatprep.subr.bf16.mxu0 0
  %490 = vmatpush2.bf16.msra.mxu0 0
  %491 = vmatprep.subr.bf16.mxu0 0
  %492 = vmatpush2.bf16.msra.mxu0 0
  %493 = vmatprep.subr.bf16.mxu0 0
  %494 = vmatpush2.bf16.msra.mxu0 0
  %495 = vmatprep.subr.bf16.mxu0 0
  %496 = vmatpush2.bf16.msra.mxu0 0
  %497 = vmatprep.subr.bf16.mxu0 0
  %498 = vmatpush2.bf16.msra.mxu0 0
  %499 = vmatprep.mubr.bf16.mxu0 0
  %500 = vmatmul.mubr.bf16.gmra.mxu0 %v355
  %v501 = vpop.f32.mrf.mxu0
  %v502 = vadd.f32 0.0, %v501
  %v503 = vpop.f32.mrf.mxu0
  %v504 = vpop.f32.mrf.mxu0
  %v505 = vadd.f32 0.0, %v504
  %v506 = vpop.f32.mrf.mxu0
  %507 = vmatprep.mubr.bf16.mxu0 0
  %508 = vmatmul.mubr.bf16.gmra.mxu0 %v356
  %v509 = vpop.f32.mrf.mxu0
  %v510 = vadd.f32 0.0, %v509
  %v511 = vpop.f32.mrf.mxu0
  %v512 = vpop.f32.mrf.mxu0
  %v513 = vadd.f32 0.0, %v512
  %v514 = vpop.f32.mrf.mxu0
  %515 = vmatprep.mubr.bf16.mxu0 0
  %516 = vmatmul.mubr.bf16.gmra.mxu0 %v357
  %v517 = vpop.f32.mrf.mxu0
  %v518 = vadd.f32 0.0, %v517
  %v519 = vpop.f32.mrf.mxu0
  %v520 = vpop.f32.mrf.mxu0
  %v521 = vadd.f32 0.0, %v520
  %v522 = vpop.f32.mrf.mxu0
  %523 = vmatprep.mubr.bf16.mxu0 0
  %524 = vmatmul.mubr.bf16.gmra.mxu0 %v358
  %v525 = vpop.f32.mrf.mxu0
  %v526 = vadd.f32 0.0, %v525
  %v527 = vpop.f32.mrf.mxu0
  %v528 = vpop.f32.mrf.mxu0
  %v529 = vadd.f32 0.0, %v528
  %v530 = vpop.f32.mrf.mxu0
  %531 = vmatprep.mubr.bf16.mxu0 0
  %532 = vmatmul.mubr.bf16.gmra.mxu0 %v359
  %v533 = vpop.f32.mrf.mxu0
  %v534 = vadd.f32 0.0, %v533
  %v535 = vpop.f32.mrf.mxu0
  %v536 = vpop.f32.mrf.mxu0
  %v537 = vadd.f32 0.0, %v536
  %v538 = vpop.f32.mrf.mxu0
  %539 = vmatprep.mubr.bf16.mxu0 0
  %540 = vmatmul.mubr.bf16.gmra.mxu0 %v360
  %v541 = vpop.f32.mrf.mxu0
  %v542 = vadd.f32 0.0, %v541
  %v543 = vpop.f32.mrf.mxu0
  %v544 = vpop.f32.mrf.mxu0
  %v545 = vadd.f32 0.0, %v544
  %v546 = vpop.f32.mrf.mxu0
  %547 = vmatprep.mubr.bf16.mxu0 0
  %548 = vmatmul.mubr.bf16.gmra.mxu0 %v361
  %v549 = vpop.f32.mrf.mxu0
  %v550 = vadd.f32 0.0, %v549
  %v551 = vpop.f32.mrf.mxu0
  %v552 = vpop.f32.mrf.mxu0
  %v553 = vadd.f32 0.0, %v552
  %v554 = vpop.f32.mrf.mxu0
  %555 = vmatprep.mubr.bf16.mxu0 0
  %556 = vmatmul.mubr.bf16.gmra.mxu0 %v362
  %v557 = vpop.f32.mrf.mxu0
  %v558 = vadd.f32 0.0, %v557
  %v559 = vpop.f32.mrf.mxu0
  %v560 = vpop.f32.mrf.mxu0
  %v561 = vadd.f32 0.0, %v560
  %v562 = vpop.f32.mrf.mxu0
  %563 = vmatprep.mubr.bf16.mxu0 0
  %564 = vmatmul.mubr.bf16.gmra.mxu0 %v363
  %v565 = vpop.f32.mrf.mxu0
  %v566 = vadd.f32 0.0, %v565
  %v567 = vpop.f32.mrf.mxu0
  %v568 = vpop.f32.mrf.mxu0
  %v569 = vadd.f32 0.0, %v568
  %v570 = vpop.f32.mrf.mxu0
  %571 = vmatprep.mubr.bf16.mxu0 0
  %572 = vmatmul.mubr.bf16.gmra.mxu0 %v364
  %v573 = vpop.f32.mrf.mxu0
  %v574 = vadd.f32 0.0, %v573
  %v575 = vpop.f32.mrf.mxu0
  %v576 = vpop.f32.mrf.mxu0
  %v577 = vadd.f32 0.0, %v576
  %v578 = vpop.f32.mrf.mxu0
  %579 = vmatprep.mubr.bf16.mxu0 0
  %580 = vmatmul.mubr.bf16.gmra.mxu0 %v365
  %v581 = vpop.f32.mrf.mxu0
  %v582 = vadd.f32 0.0, %v581
  %v583 = vpop.f32.mrf.mxu0
  %v584 = vpop.f32.mrf.mxu0
  %v585 = vadd.f32 0.0, %v584
  %v586 = vpop.f32.mrf.mxu0
  %587 = vmatprep.mubr.bf16.mxu0 0
  %588 = vmatmul.mubr.bf16.gmra.mxu0 %v366
  %v589 = vpop.f32.mrf.mxu0
  %v590 = vadd.f32 0.0, %v589
  %v591 = vpop.f32.mrf.mxu0
  %v592 = vpop.f32.mrf.mxu0
  %v593 = vadd.f32 0.0, %v592
  %v594 = vpop.f32.mrf.mxu0
  %595 = vmatprep.mubr.bf16.mxu0 0
  %596 = vmatmul.mubr.bf16.gmra.mxu0 %v367
  %v597 = vpop.f32.mrf.mxu0
  %v598 = vadd.f32 0.0, %v597
  %v599 = vpop.f32.mrf.mxu0
  %v600 = vpop.f32.mrf.mxu0
  %v601 = vadd.f32 0.0, %v600
  %v602 = vpop.f32.mrf.mxu0
  %603 = vmatprep.mubr.bf16.mxu0 0
  %604 = vmatmul.mubr.bf16.gmra.mxu0 %v368
  %v605 = vpop.f32.mrf.mxu0
  %v606 = vadd.f32 0.0, %v605
  %v607 = vpop.f32.mrf.mxu0
  %v608 = vpop.f32.mrf.mxu0
  %v609 = vadd.f32 0.0, %v608
  %v610 = vpop.f32.mrf.mxu0
  %611 = vmatprep.mubr.bf16.mxu0 0
  %612 = vmatmul.mubr.bf16.gmra.mxu0 %v369
  %v613 = vpop.f32.mrf.mxu0
  %v614 = vadd.f32 0.0, %v613
  %v615 = vpop.f32.mrf.mxu0
  %v616 = vpop.f32.mrf.mxu0
  %v617 = vadd.f32 0.0, %v616
  %v618 = vpop.f32.mrf.mxu0
  %619 = vmatprep.mubr.bf16.mxu0 0
  %620 = vmatmul.mubr.bf16.gmra.mxu0 %v370
  %v621 = vpop.f32.mrf.mxu0
  %v622 = vadd.f32 0.0, %v621
  %v623 = vpop.f32.mrf.mxu0
  %v624 = vpop.f32.mrf.mxu0
  %v625 = vadd.f32 0.0, %v624
  %v626 = vpop.f32.mrf.mxu0
  %627 = vmatprep.mubr.bf16.mxu0 0
  %628 = vmatmul.mubr.bf16.gmra.mxu0 %v371
  %v629 = vpop.f32.mrf.mxu0
  %v630 = vadd.f32 0.0, %v629
  %v631 = vpop.f32.mrf.mxu0
  %v632 = vpop.f32.mrf.mxu0
  %v633 = vadd.f32 0.0, %v632
  %v634 = vpop.f32.mrf.mxu0
  %635 = vmatprep.mubr.bf16.mxu0 0
  %636 = vmatmul.mubr.bf16.gmra.mxu0 %v372
  %v637 = vpop.f32.mrf.mxu0
  %v638 = vadd.f32 0.0, %v637
  %v639 = vpop.f32.mrf.mxu0
  %v640 = vpop.f32.mrf.mxu0
  %v641 = vadd.f32 0.0, %v640
  %v642 = vpop.f32.mrf.mxu0
  %643 = vmatprep.mubr.bf16.mxu0 0
  %644 = vmatmul.mubr.bf16.gmra.mxu0 %v373
  %v645 = vpop.f32.mrf.mxu0
  %v646 = vadd.f32 0.0, %v645
  %v647 = vpop.f32.mrf.mxu0
  %v648 = vpop.f32.mrf.mxu0
  %v649 = vadd.f32 0.0, %v648
  %v650 = vpop.f32.mrf.mxu0
  %651 = vmatprep.mubr.bf16.mxu0 0
  %652 = vmatmul.mubr.bf16.gmra.mxu0 %v374
  %v653 = vpop.f32.mrf.mxu0
  %v654 = vadd.f32 0.0, %v653
  %v655 = vpop.f32.mrf.mxu0
  %v656 = vpop.f32.mrf.mxu0
  %v657 = vadd.f32 0.0, %v656
  %v658 = vpop.f32.mrf.mxu0
  %659 = vmatprep.mubr.bf16.mxu0 0
  %660 = vmatmul.mubr.bf16.gmra.mxu0 %v375
  %v661 = vpop.f32.mrf.mxu0
  %v662 = vadd.f32 0.0, %v661
  %v663 = vpop.f32.mrf.mxu0
  %v664 = vpop.f32.mrf.mxu0
  %v665 = vadd.f32 0.0, %v664
  %v666 = vpop.f32.mrf.mxu0
  %667 = vmatprep.mubr.bf16.mxu0 0
  %668 = vmatmul.mubr.bf16.gmra.mxu0 %v376
  %v669 = vpop.f32.mrf.mxu0
  %v670 = vadd.f32 0.0, %v669
  %v671 = vpop.f32.mrf.mxu0
  %v672 = vpop.f32.mrf.mxu0
  %v673 = vadd.f32 0.0, %v672
  %v674 = vpop.f32.mrf.mxu0
  %675 = vmatprep.mubr.bf16.mxu0 0
  %676 = vmatmul.mubr.bf16.gmra.mxu0 %v377
  %v677 = vpop.f32.mrf.mxu0
  %v678 = vadd.f32 0.0, %v677
  %v679 = vpop.f32.mrf.mxu0
  %v680 = vpop.f32.mrf.mxu0
  %v681 = vadd.f32 0.0, %v680
  %v682 = vpop.f32.mrf.mxu0
  %683 = vmatprep.mubr.bf16.mxu0 0
  %684 = vmatmul.mubr.bf16.gmra.mxu0 %v378
  %v685 = vpop.f32.mrf.mxu0
  %v686 = vadd.f32 0.0, %v685
  %v687 = vpop.f32.mrf.mxu0
  %v688 = vpop.f32.mrf.mxu0
  %v689 = vadd.f32 0.0, %v688
  %v690 = vpop.f32.mrf.mxu0
  %691 = vmatprep.mubr.bf16.mxu0 0
  %692 = vmatmul.mubr.bf16.gmra.mxu0 %v379
  %v693 = vpop.f32.mrf.mxu0
  %v694 = vadd.f32 0.0, %v693
  %v695 = vpop.f32.mrf.mxu0
  %v696 = vpop.f32.mrf.mxu0
  %v697 = vadd.f32 0.0, %v696
  %v698 = vpop.f32.mrf.mxu0
  %699 = vmatprep.mubr.bf16.mxu0 0
  %700 = vmatmul.mubr.bf16.gmra.mxu0 %v380
  %v701 = vpop.f32.mrf.mxu0
  %v702 = vadd.f32 0.0, %v701
  %v703 = vpop.f32.mrf.mxu0
  %v704 = vpop.f32.mrf.mxu0
  %v705 = vadd.f32 0.0, %v704
  %v706 = vpop.f32.mrf.mxu0
  %707 = vmatprep.mubr.bf16.mxu0 0
  %708 = vmatmul.mubr.bf16.gmra.mxu0 %v381
  %v709 = vpop.f32.mrf.mxu0
  %v710 = vadd.f32 0.0, %v709
  %v711 = vpop.f32.mrf.mxu0
  %v712 = vpop.f32.mrf.mxu0
  %v713 = vadd.f32 0.0, %v712
  %v714 = vpop.f32.mrf.mxu0
  %715 = vmatprep.mubr.bf16.mxu0 0
  %716 = vmatmul.mubr.bf16.gmra.mxu0 %v382
  %v717 = vpop.f32.mrf.mxu0
  %v718 = vadd.f32 0.0, %v717
  %v719 = vpop.f32.mrf.mxu0
  %v720 = vpop.f32.mrf.mxu0
  %v721 = vadd.f32 0.0, %v720
  %v722 = vpop.f32.mrf.mxu0
  %723 = vmatprep.mubr.bf16.mxu0 0
  %724 = vmatmul.mubr.bf16.gmra.mxu0 %v383
  %v725 = vpop.f32.mrf.mxu0
  %v726 = vadd.f32 0.0, %v725
  %v727 = vpop.f32.mrf.mxu0
  %v728 = vpop.f32.mrf.mxu0
  %v729 = vadd.f32 0.0, %v728
  %v730 = vpop.f32.mrf.mxu0
  %731 = vmatprep.mubr.bf16.mxu0 0
  %732 = vmatmul.mubr.bf16.gmra.mxu0 %v384
  %v733 = vpop.f32.mrf.mxu0
  %v734 = vadd.f32 0.0, %v733
  %v735 = vpop.f32.mrf.mxu0
  %v736 = vpop.f32.mrf.mxu0
  %v737 = vadd.f32 0.0, %v736
  %v738 = vpop.f32.mrf.mxu0
  %739 = vmatprep.mubr.bf16.mxu0 0
  %740 = vmatmul.mubr.bf16.gmra.mxu0 %v385
  %v741 = vpop.f32.mrf.mxu0
  %v742 = vadd.f32 0.0, %v741
  %v743 = vpop.f32.mrf.mxu0
  %v744 = vpop.f32.mrf.mxu0
  %v745 = vadd.f32 0.0, %v744
  %v746 = vpop.f32.mrf.mxu0
  %747 = vmatprep.mubr.bf16.mxu0 0
  %748 = vmatmul.mubr.bf16.gmra.mxu0 %v386
  %v749 = vpop.f32.mrf.mxu0
  %v750 = vadd.f32 0.0, %v749
  %v751 = vpop.f32.mrf.mxu0
  %v752 = vpop.f32.mrf.mxu0
  %v753 = vadd.f32 0.0, %v752
  %v754 = vpop.f32.mrf.mxu0
  %755 = vdwg.mxu0
  %v756 = vadd.f32 %v83, %v502
  %v757 = vadd.f32 %v84, %v505
  %v758 = vadd.f32 %v85, %v510
  %v759 = vadd.f32 %v86, %v513
  %v760 = vadd.f32 %v87, %v518
  %v761 = vadd.f32 %v88, %v521
  %v762 = vadd.f32 %v89, %v526
  %v763 = vadd.f32 %v90, %v529
  %v764 = vadd.f32 %v91, %v534
  %v765 = vadd.f32 %v92, %v537
  %v766 = vadd.f32 %v93, %v542
  %v767 = vadd.f32 %v94, %v545
  %v768 = vadd.f32 %v95, %v550
  %v769 = vadd.f32 %v96, %v553
  %v770 = vadd.f32 %v97, %v558
  %v771 = vadd.f32 %v98, %v561
  %v772 = vadd.f32 %v99, %v566
  %v773 = vadd.f32 %v100, %v569
  %v774 = vadd.f32 %v101, %v574
  %v775 = vadd.f32 %v102, %v577
  %v776 = vadd.f32 %v103, %v582
  %v777 = vadd.f32 %v104, %v585
  %v778 = vadd.f32 %v105, %v590
  %v779 = vadd.f32 %v106, %v593
  %v780 = vadd.f32 %v107, %v598
  %v781 = vadd.f32 %v108, %v601
  %v782 = vadd.f32 %v109, %v606
  %v783 = vadd.f32 %v110, %v609
  %v784 = vadd.f32 %v111, %v614
  %v785 = vadd.f32 %v112, %v617
  %v786 = vadd.f32 %v113, %v622
  %v787 = vadd.f32 %v114, %v625
  %v788 = vadd.f32 %v115, %v630
  %v789 = vadd.f32 %v116, %v633
  %v790 = vadd.f32 %v117, %v638
  %v791 = vadd.f32 %v118, %v641
  %v792 = vadd.f32 %v119, %v646
  %v793 = vadd.f32 %v120, %v649
  %v794 = vadd.f32 %v121, %v654
  %v795 = vadd.f32 %v122, %v657
  %v796 = vadd.f32 %v123, %v662
  %v797 = vadd.f32 %v124, %v665
  %v798 = vadd.f32 %v125, %v670
  %v799 = vadd.f32 %v126, %v673
  %v800 = vadd.f32 %v127, %v678
  %v801 = vadd.f32 %v128, %v681
  %v802 = vadd.f32 %v129, %v686
  %v803 = vadd.f32 %v130, %v689
  %v804 = vadd.f32 %v131, %v694
  %v805 = vadd.f32 %v132, %v697
  %v806 = vadd.f32 %v133, %v702
  %v807 = vadd.f32 %v134, %v705
  %v808 = vadd.f32 %v135, %v710
  %v809 = vadd.f32 %v136, %v713
  %v810 = vadd.f32 %v137, %v718
  %v811 = vadd.f32 %v138, %v721
  %v812 = vadd.f32 %v139, %v726
  %v813 = vadd.f32 %v140, %v729
  %v814 = vadd.f32 %v141, %v734
  %v815 = vadd.f32 %v142, %v737
  %v816 = vadd.f32 %v143, %v742
  %v817 = vadd.f32 %v144, %v745
  %v818 = vadd.f32 %v145, %v750
  %v819 = vadd.f32 %v146, %v753
  %820 = vst [vmem:[#allocation2] sm:$0xff] %v756
  %821 = vst [vmem:[#allocation2 + $0x8] sm:$0xff] %v757
  %822 = vst [vmem:[#allocation2 + $0x10] sm:$0xff] %v758
  %823 = vst [vmem:[#allocation2 + $0x18] sm:$0xff] %v759
  %824 = vst [vmem:[#allocation2 + $0x20] sm:$0xff] %v760
  %825 = vst [vmem:[#allocation2 + $0x28] sm:$0xff] %v761
  %826 = vst [vmem:[#allocation2 + $0x30] sm:$0xff] %v762
  %827 = vst [vmem:[#allocation2 + $0x38] sm:$0xff] %v763
  %828 = vst [vmem:[#allocation2 + $0x40] sm:$0xff] %v764
  %829 = vst [vmem:[#allocation2 + $0x48] sm:$0xff] %v765
  %830 = vst [vmem:[#allocation2 + $0x50] sm:$0xff] %v766
  %831 = vst [vmem:[#allocation2 + $0x58] sm:$0xff] %v767
  %832 = vst [vmem:[#allocation2 + $0x60] sm:$0xff] %v768
  %833 = vst [vmem:[#allocation2 + $0x68] sm:$0xff] %v769
  %834 = vst [vmem:[#allocation2 + $0x70] sm:$0xff] %v770
  %835 = vst [vmem:[#allocation2 + $0x78] sm:$0xff] %v771
  %836 = vst [vmem:[#allocation2 + $0x80] sm:$0xff] %v772
  %837 = vst [vmem:[#allocation2 + $0x88] sm:$0xff] %v773
  %838 = vst [vmem:[#allocation2 + $0x90] sm:$0xff] %v774
  %839 = vst [vmem:[#allocation2 + $0x98] sm:$0xff] %v775
  %840 = vst [vmem:[#allocation2 + $0xa0] sm:$0xff] %v776
  %841 = vst [vmem:[#allocation2 + $0xa8] sm:$0xff] %v777
  %842 = vst [vmem:[#allocation2 + $0xb0] sm:$0xff] %v778
  %843 = vst [vmem:[#allocation2 + $0xb8] sm:$0xff] %v779
  %844 = vst [vmem:[#allocation2 + $0xc0] sm:$0xff] %v780
  %845 = vst [vmem:[#allocation2 + $0xc8] sm:$0xff] %v781
  %846 = vst [vmem:[#allocation2 + $0xd0] sm:$0xff] %v782
  %847 = vst [vmem:[#allocation2 + $0xd8] sm:$0xff] %v783
  %848 = vst [vmem:[#allocation2 + $0xe0] sm:$0xff] %v784
  %849 = vst [vmem:[#allocation2 + $0xe8] sm:$0xff] %v785
  %850 = vst [vmem:[#allocation2 + $0xf0] sm:$0xff] %v786
  %851 = vst [vmem:[#allocation2 + $0xf8] sm:$0xff] %v787
  %852 = vst [vmem:[#allocation2 + $0x100] sm:$0xff] %v788
  %853 = vst [vmem:[#allocation2 + $0x108] sm:$0xff] %v789
  %854 = vst [vmem:[#allocation2 + $0x110] sm:$0xff] %v790
  %855 = vst [vmem:[#allocation2 + $0x118] sm:$0xff] %v791
  %856 = vst [vmem:[#allocation2 + $0x120] sm:$0xff] %v792
  %857 = vst [vmem:[#allocation2 + $0x128] sm:$0xff] %v793
  %858 = vst [vmem:[#allocation2 + $0x130] sm:$0xff] %v794
  %859 = vst [vmem:[#allocation2 + $0x138] sm:$0xff] %v795
  %860 = vst [vmem:[#allocation2 + $0x140] sm:$0xff] %v796
  %861 = vst [vmem:[#allocation2 + $0x148] sm:$0xff] %v797
  %862 = vst [vmem:[#allocation2 + $0x150] sm:$0xff] %v798
  %863 = vst [vmem:[#allocation2 + $0x158] sm:$0xff] %v799
  %864 = vst [vmem:[#allocation2 + $0x160] sm:$0xff] %v800
  %865 = vst [vmem:[#allocation2 + $0x168] sm:$0xff] %v801
  %866 = vst [vmem:[#allocation2 + $0x170] sm:$0xff] %v802
  %867 = vst [vmem:[#allocation2 + $0x178] sm:$0xff] %v803
  %868 = vst [vmem:[#allocation2 + $0x180] sm:$0xff] %v804
  %869 = vst [vmem:[#allocation2 + $0x188] sm:$0xff] %v805
  %870 = vst [vmem:[#allocation2 + $0x190] sm:$0xff] %v806
  %871 = vst [vmem:[#allocation2 + $0x198] sm:$0xff] %v807
  %872 = vst [vmem:[#allocation2 + $0x1a0] sm:$0xff] %v808
  %873 = vst [vmem:[#allocation2 + $0x1a8] sm:$0xff] %v809
  %874 = vst [vmem:[#allocation2 + $0x1b0] sm:$0xff] %v810
  %875 = vst [vmem:[#allocation2 + $0x1b8] sm:$0xff] %v811
  %876 = vst [vmem:[#allocation2 + $0x1c0] sm:$0xff] %v812
  %877 = vst [vmem:[#allocation2 + $0x1c8] sm:$0xff] %v813
  %878 = vst [vmem:[#allocation2 + $0x1d0] sm:$0xff] %v814
  %879 = vst [vmem:[#allocation2 + $0x1d8] sm:$0xff] %v815
  %880 = vst [vmem:[#allocation2 + $0x1e0] sm:$0xff] %v816
  %881 = vst [vmem:[#allocation2 + $0x1e8] sm:$0xff] %v817
  %882 = vst [vmem:[#allocation2 + $0x1f0] sm:$0xff] %v818
  %883 = vst [vmem:[#allocation2 + $0x1f8] sm:$0xff] %v819
  // Predicated region
  $region14: #{conv_bn_act.2} parent=0 // pred_check
    %p884 = pneg %p15
  $region15: #{conv_bn_act.2} parent=0 // pred_check_branch
    %886 = sbr.rel (%p884) target = $region17
  $region16: #{conv_bn_act.2} parent=0 // pred_region
    %v887 = vld [vmem:[#allocation2] sm:$0xff]
    %v888 = vld [vmem:[#allocation2 + $0x8] sm:$0xff]
    %v889 = vld [vmem:[#allocation2 + $0x10] sm:$0xff]
    %v890 = vld [vmem:[#allocation2 + $0x18] sm:$0xff]
    %v891 = vld [vmem:[#allocation2 + $0x20] sm:$0xff]
    %v892 = vld [vmem:[#allocation2 + $0x28] sm:$0xff]
    %v893 = vld [vmem:[#allocation2 + $0x30] sm:$0xff]
    %v894 = vld [vmem:[#allocation2 + $0x38] sm:$0xff]
    %v895 = vld [vmem:[#allocation2 + $0x40] sm:$0xff]
    %v896 = vld [vmem:[#allocation2 + $0x48] sm:$0xff]
    %v897 = vld [vmem:[#allocation2 + $0x50] sm:$0xff]
    %v898 = vld [vmem:[#allocation2 + $0x58] sm:$0xff]
    %v899 = vld [vmem:[#allocation2 + $0x60] sm:$0xff]
    %v900 = vld [vmem:[#allocation2 + $0x68] sm:$0xff]
    %v901 = vld [vmem:[#allocation2 + $0x70] sm:$0xff]
    %v902 = vld [vmem:[#allocation2 + $0x78] sm:$0xff]
    %v903 = vld [vmem:[#allocation2 + $0x80] sm:$0xff]
    %v904 = vld [vmem:[#allocation2 + $0x88] sm:$0xff]
    %v905 = vld [vmem:[#allocation2 + $0x90] sm:$0xff]
    %v906 = vld [vmem:[#allocation2 + $0x98] sm:$0xff]
    %v907 = vld [vmem:[#allocation2 + $0xa0] sm:$0xff]
    %v908 = vld [vmem:[#allocation2 + $0xa8] sm:$0xff]
    %v909 = vld [vmem:[#allocation2 + $0xb0] sm:$0xff]
    %v910 = vld [vmem:[#allocation2 + $0xb8] sm:$0xff]
    %v911 = vld [vmem:[#allocation2 + $0xc0] sm:$0xff]
    %v912 = vld [vmem:[#allocation2 + $0xc8] sm:$0xff]
    %v913 = vld [vmem:[#allocation2 + $0xd0] sm:$0xff]
    %v914 = vld [vmem:[#allocation2 + $0xd8] sm:$0xff]
    %v915 = vld [vmem:[#allocation2 + $0xe0] sm:$0xff]
    %v916 = vld [vmem:[#allocation2 + $0xe8] sm:$0xff]
    %v917 = vld [vmem:[#allocation2 + $0xf0] sm:$0xff]
    %v918 = vld [vmem:[#allocation2 + $0xf8] sm:$0xff]
    %v919 = vld [vmem:[#allocation2 + $0x100] sm:$0xff]
    %v920 = vld [vmem:[#allocation2 + $0x108] sm:$0xff]
    %v921 = vld [vmem:[#allocation2 + $0x110] sm:$0xff]
    %v922 = vld [vmem:[#allocation2 + $0x118] sm:$0xff]
    %v923 = vld [vmem:[#allocation2 + $0x120] sm:$0xff]
    %v924 = vld [vmem:[#allocation2 + $0x128] sm:$0xff]
    %v925 = vld [vmem:[#allocation2 + $0x130] sm:$0xff]
    %v926 = vld [vmem:[#allocation2 + $0x138] sm:$0xff]
    %v927 = vld [vmem:[#allocation2 + $0x140] sm:$0xff]
    %v928 = vld [vmem:[#allocation2 + $0x148] sm:$0xff]
    %v929 = vld [vmem:[#allocation2 + $0x150] sm:$0xff]
    %v930 = vld [vmem:[#allocation2 + $0x158] sm:$0xff]
    %v931 = vld [vmem:[#allocation2 + $0x160] sm:$0xff]
    %v932 = vld [vmem:[#allocation2 + $0x168] sm:$0xff]
    %v933 = vld [vmem:[#allocation2 + $0x170] sm:$0xff]
    %v934 = vld [vmem:[#allocation2 + $0x178] sm:$0xff]
    %v935 = vld [vmem:[#allocation2 + $0x180] sm:$0xff]
    %v936 = vld [vmem:[#allocation2 + $0x188] sm:$0xff]
    %v937 = vld [vmem:[#allocation2 + $0x190] sm:$0xff]
    %v938 = vld [vmem:[#allocation2 + $0x198] sm:$0xff]
    %v939 = vld [vmem:[#allocation2 + $0x1a0] sm:$0xff]
    %v940 = vld [vmem:[#allocation2 + $0x1a8] sm:$0xff]
    %v941 = vld [vmem:[#allocation2 + $0x1b0] sm:$0xff]
    %v942 = vld [vmem:[#allocation2 + $0x1b8] sm:$0xff]
    %v943 = vld [vmem:[#allocation2 + $0x1c0] sm:$0xff]
    %v944 = vld [vmem:[#allocation2 + $0x1c8] sm:$0xff]
    %v945 = vld [vmem:[#allocation2 + $0x1d0] sm:$0xff]
    %v946 = vld [vmem:[#allocation2 + $0x1d8] sm:$0xff]
    %v947 = vld [vmem:[#allocation2 + $0x1e0] sm:$0xff]
    %v948 = vld [vmem:[#allocation2 + $0x1e8] sm:$0xff]
    %v949 = vld [vmem:[#allocation2 + $0x1f0] sm:$0xff]
    %v950 = vld [vmem:[#allocation2 + $0x1f8] sm:$0xff]
    %951 = vst [vmem:[%s2] sm:$0xff] %v887
    %952 = vst [vmem:[%s2 + $0x8] sm:$0xff] %v888
    %953 = vst [vmem:[%s2 + $0x10] sm:$0xff] %v889
    %954 = vst [vmem:[%s2 + $0x18] sm:$0xff] %v890
    %955 = vst [vmem:[%s2 + $0x20] sm:$0xff] %v891
    %956 = vst [vmem:[%s2 + $0x28] sm:$0xff] %v892
    %957 = vst [vmem:[%s2 + $0x30] sm:$0xff] %v893
    %958 = vst [vmem:[%s2 + $0x38] sm:$0xff] %v894
    %959 = vst [vmem:[%s2 + $0x40] sm:$0xff] %v895
    %960 = vst [vmem:[%s2 + $0x48] sm:$0xff] %v896
    %961 = vst [vmem:[%s2 + $0x50] sm:$0xff] %v897
    %962 = vst [vmem:[%s2 + $0x58] sm:$0xff] %v898
    %963 = vst [vmem:[%s2 + $0x60] sm:$0xff] %v899
    %964 = vst [vmem:[%s2 + $0x68] sm:$0xff] %v900
    %965 = vst [vmem:[%s2 + $0x70] sm:$0xff] %v901
    %966 = vst [vmem:[%s2 + $0x78] sm:$0xff] %v902
    %967 = vst [vmem:[%s2 + $0x80] sm:$0xff] %v903
    %968 = vst [vmem:[%s2 + $0x88] sm:$0xff] %v904
    %969 = vst [vmem:[%s2 + $0x90] sm:$0xff] %v905
    %970 = vst [vmem:[%s2 + $0x98] sm:$0xff] %v906
    %971 = vst [vmem:[%s2 + $0xa0] sm:$0xff] %v907
    %972 = vst [vmem:[%s2 + $0xa8] sm:$0xff] %v908
    %973 = vst [vmem:[%s2 + $0xb0] sm:$0xff] %v909
    %974 = vst [vmem:[%s2 + $0xb8] sm:$0xff] %v910
    %975 = vst [vmem:[%s2 + $0xc0] sm:$0xff] %v911
    %976 = vst [vmem:[%s2 + $0xc8] sm:$0xff] %v912
    %977 = vst [vmem:[%s2 + $0xd0] sm:$0xff] %v913
    %978 = vst [vmem:[%s2 + $0xd8] sm:$0xff] %v914
    %979 = vst [vmem:[%s2 + $0xe0] sm:$0xff] %v915
    %980 = vst [vmem:[%s2 + $0xe8] sm:$0xff] %v916
    %981 = vst [vmem:[%s2 + $0xf0] sm:$0xff] %v917
    %982 = vst [vmem:[%s2 + $0xf8] sm:$0xff] %v918
    %983 = vst [vmem:[%s2 + $0x100] sm:$0xff] %v919
    %984 = vst [vmem:[%s2 + $0x108] sm:$0xff] %v920
    %985 = vst [vmem:[%s2 + $0x110] sm:$0xff] %v921
    %986 = vst [vmem:[%s2 + $0x118] sm:$0xff] %v922
    %987 = vst [vmem:[%s2 + $0x120] sm:$0xff] %v923
    %988 = vst [vmem:[%s2 + $0x128] sm:$0xff] %v924
    %989 = vst [vmem:[%s2 + $0x130] sm:$0xff] %v925
    %990 = vst [vmem:[%s2 + $0x138] sm:$0xff] %v926
    %991 = vst [vmem:[%s2 + $0x140] sm:$0xff] %v927
    %992 = vst [vmem:[%s2 + $0x148] sm:$0xff] %v928
    %993 = vst [vmem:[%s2 + $0x150] sm:$0xff] %v929
    %994 = vst [vmem:[%s2 + $0x158] sm:$0xff] %v930
    %995 = vst [vmem:[%s2 + $0x160] sm:$0xff] %v931
    %996 = vst [vmem:[%s2 + $0x168] sm:$0xff] %v932
    %997 = vst [vmem:[%s2 + $0x170] sm:$0xff] %v933
    %998 = vst [vmem:[%s2 + $0x178] sm:$0xff] %v934
    %999 = vst [vmem:[%s2 + $0x180] sm:$0xff] %v935
    %1000 = vst [vmem:[%s2 + $0x188] sm:$0xff] %v936
    %1001 = vst [vmem:[%s2 + $0x190] sm:$0xff] %v937
    %1002 = vst [vmem:[%s2 + $0x198] sm:$0xff] %v938
    %1003 = vst [vmem:[%s2 + $0x1a0] sm:$0xff] %v939
    %1004 = vst [vmem:[%s2 + $0x1a8] sm:$0xff] %v940
    %1005 = vst [vmem:[%s2 + $0x1b0] sm:$0xff] %v941
    %1006 = vst [vmem:[%s2 + $0x1b8] sm:$0xff] %v942
    %1007 = vst [vmem:[%s2 + $0x1c0] sm:$0xff] %v943
    %1008 = vst [vmem:[%s2 + $0x1c8] sm:$0xff] %v944
    %1009 = vst [vmem:[%s2 + $0x1d0] sm:$0xff] %v945
    %1010 = vst [vmem:[%s2 + $0x1d8] sm:$0xff] %v946
    %1011 = vst [vmem:[%s2 + $0x1e0] sm:$0xff] %v947
    %1012 = vst [vmem:[%s2 + $0x1e8] sm:$0xff] %v948
    %1013 = vst [vmem:[%s2 + $0x1f0] sm:$0xff] %v949
    %1014 = vst [vmem:[%s2 + $0x1f8] sm:$0xff] %v950
    %v1015 = vadd.f32 %v887, %v888
    %v1016 = vadd.f32 %v1015, %v889
    %v1017 = vadd.f32 %v1016, %v890
    %v1018 = vadd.f32 %v1017, %v891
    %v1019 = vadd.f32 %v1018, %v892
    %v1020 = vadd.f32 %v1019, %v893
    %v1021 = vadd.f32 %v1020, %v894
    %v1022 = vadd.f32 %v1021, %v895
    %v1023 = vadd.f32 %v1022, %v896
    %v1024 = vadd.f32 %v1023, %v897
    %v1025 = vadd.f32 %v1024, %v898
    %v1026 = vadd.f32 %v1025, %v899
    %v1027 = vadd.f32 %v1026, %v900
    %v1028 = vadd.f32 %v1027, %v901
    %v1029 = vadd.f32 %v1028, %v902
    %v1030 = vadd.f32 %v1029, %v903
    %v1031 = vadd.f32 %v1030, %v904
    %v1032 = vadd.f32 %v1031, %v905
    %v1033 = vadd.f32 %v1032, %v906
    %v1034 = vadd.f32 %v1033, %v907
    %v1035 = vadd.f32 %v1034, %v908
    %v1036 = vadd.f32 %v1035, %v909
    %v1037 = vadd.f32 %v1036, %v910
    %v1038 = vadd.f32 %v1037, %v911
    %v1039 = vadd.f32 %v1038, %v912
    %v1040 = vadd.f32 %v1039, %v913
    %v1041 = vadd.f32 %v1040, %v914
    %v1042 = vadd.f32 %v1041, %v915
    %v1043 = vadd.f32 %v1042, %v916
    %v1044 = vadd.f32 %v1043, %v917
    %v1045 = vadd.f32 %v1044, %v918
    %v1046 = vadd.f32 %v1045, %v919
    %v1047 = vadd.f32 %v1046, %v920
    %v1048 = vadd.f32 %v1047, %v921
    %v1049 = vadd.f32 %v1048, %v922
    %v1050 = vadd.f32 %v1049, %v923
    %v1051 = vadd.f32 %v1050, %v924
    %v1052 = vadd.f32 %v1051, %v925
    %v1053 = vadd.f32 %v1052, %v926
    %v1054 = vadd.f32 %v1053, %v927
    %v1055 = vadd.f32 %v1054, %v928
    %v1056 = vadd.f32 %v1055, %v929
    %v1057 = vadd.f32 %v1056, %v930
    %v1058 = vadd.f32 %v1057, %v931
    %v1059 = vadd.f32 %v1058, %v932
    %v1060 = vadd.f32 %v1059, %v933
    %v1061 = vadd.f32 %v1060, %v934
    %v1062 = vadd.f32 %v1061, %v935
    %v1063 = vadd.f32 %v1062, %v936
    %v1064 = vadd.f32 %v1063, %v937
    %v1065 = vadd.f32 %v1064, %v938
    %v1066 = vadd.f32 %v1065, %v939
    %v1067 = vadd.f32 %v1066, %v940
    %v1068 = vadd.f32 %v1067, %v941
    %v1069 = vadd.f32 %v1068, %v942
    %v1070 = vadd.f32 %v1069, %v943
    %v1071 = vadd.f32 %v1070, %v944
    %v1072 = vadd.f32 %v1071, %v945
    %v1073 = vadd.f32 %v1072, %v946
    %v1074 = vadd.f32 %v1073, %v947
    %v1075 = vadd.f32 %v1074, %v948
    %v1076 = vadd.f32 %v1075, %v949
    %v1077 = vadd.f32 %v1076, %v950
    %v1078 = vrot.slane %v1077, 4
    %v1079 = vadd.f32 %v1077, %v1078
    %v1080 = vrot.slane %v1079, 2
    %v1081 = vadd.f32 %v1079, %v1080
    %v1082 = vrot.slane %v1081, 1
    %v1083 = vadd.f32 %v1081, %v1082
    %1084 = vst [vmem:[%s3] sm:$0x1] %v1083
    %v1085 = vmul.f32 %v887, %v887
    %v1086 = vmul.f32 %v888, %v888
    %v1087 = vmul.f32 %v889, %v889
    %v1088 = vmul.f32 %v890, %v890
    %v1089 = vmul.f32 %v891, %v891
    %v1090 = vmul.f32 %v892, %v892
    %v1091 = vmul.f32 %v893, %v893
    %v1092 = vmul.f32 %v894, %v894
    %v1093 = vmul.f32 %v895, %v895
    %v1094 = vmul.f32 %v896, %v896
    %v1095 = vmul.f32 %v897, %v897
    %v1096 = vmul.f32 %v898, %v898
    %v1097 = vmul.f32 %v899, %v899
    %v1098 = vmul.f32 %v900, %v900
    %v1099 = vmul.f32 %v901, %v901
    %v1100 = vmul.f32 %v902, %v902
    %v1101 = vmul.f32 %v903, %v903
    %v1102 = vmul.f32 %v904, %v904
    %v1103 = vmul.f32 %v905, %v905
    %v1104 = vmul.f32 %v906, %v906
    %v1105 = vmul.f32 %v907, %v907
    %v1106 = vmul.f32 %v908, %v908
    %v1107 = vmul.f32 %v909, %v909
    %v1108 = vmul.f32 %v910, %v910
    %v1109 = vmul.f32 %v911, %v911
    %v1110 = vmul.f32 %v912, %v912
    %v1111 = vmul.f32 %v913, %v913
    %v1112 = vmul.f32 %v914, %v914
    %v1113 = vmul.f32 %v915, %v915
    %v1114 = vmul.f32 %v916, %v916
    %v1115 = vmul.f32 %v917, %v917
    %v1116 = vmul.f32 %v918, %v918
    %v1117 = vmul.f32 %v919, %v919
    %v1118 = vmul.f32 %v920, %v920
    %v1119 = vmul.f32 %v921, %v921
    %v1120 = vmul.f32 %v922, %v922
    %v1121 = vmul.f32 %v923, %v923
    %v1122 = vmul.f32 %v924, %v924
    %v1123 = vmul.f32 %v925, %v925
    %v1124 = vmul.f32 %v926, %v926
    %v1125 = vmul.f32 %v927, %v927
    %v1126 = vmul.f32 %v928, %v928
    %v1127 = vmul.f32 %v929, %v929
    %v1128 = vmul.f32 %v930, %v930
    %v1129 = vmul.f32 %v931, %v931
    %v1130 = vmul.f32 %v932, %v932
    %v1131 = vmul.f32 %v933, %v933
    %v1132 = vmul.f32 %v934, %v934
    %v1133 = vmul.f32 %v935, %v935
    %v1134 = vmul.f32 %v936, %v936
    %v1135 = vmul.f32 %v937, %v937
    %v1136 = vmul.f32 %v938, %v938
    %v1137 = vmul.f32 %v939, %v939
    %v1138 = vmul.f32 %v940, %v940
    %v1139 = vmul.f32 %v941, %v941
    %v1140 = vmul.f32 %v942, %v942
    %v1141 = vmul.f32 %v943, %v943
    %v1142 = vmul.f32 %v944, %v944
    %v1143 = vmul.f32 %v945, %v945
    %v1144 = vmul.f32 %v946, %v946
    %v1145 = vmul.f32 %v947, %v947
    %v1146 = vmul.f32 %v948, %v948
    %v1147 = vmul.f32 %v949, %v949
    %v1148 = vmul.f32 %v950, %v950
    %v1149 = vadd.f32 %v1085, %v1086
    %v1150 = vadd.f32 %v1149, %v1087
    %v1151 = vadd.f32 %v1150, %v1088
    %v1152 = vadd.f32 %v1151, %v1089
    %v1153 = vadd.f32 %v1152, %v1090
    %v1154 = vadd.f32 %v1153, %v1091
    %v1155 = vadd.f32 %v1154, %v1092
    %v1156 = vadd.f32 %v1155, %v1093
    %v1157 = vadd.f32 %v1156, %v1094
    %v1158 = vadd.f32 %v1157, %v1095
    %v1159 = vadd.f32 %v1158, %v1096
    %v1160 = vadd.f32 %v1159, %v1097
    %v1161 = vadd.f32 %v1160, %v1098
    %v1162 = vadd.f32 %v1161, %v1099
    %v1163 = vadd.f32 %v1162, %v1100
    %v1164 = vadd.f32 %v1163, %v1101
    %v1165 = vadd.f32 %v1164, %v1102
    %v1166 = vadd.f32 %v1165, %v1103
    %v1167 = vadd.f32 %v1166, %v1104
    %v1168 = vadd.f32 %v1167, %v1105
    %v1169 = vadd.f32 %v1168, %v1106
    %v1170 = vadd.f32 %v1169, %v1107
    %v1171 = vadd.f32 %v1170, %v1108
    %v1172 = vadd.f32 %v1171, %v1109
    %v1173 = vadd.f32 %v1172, %v1110
    %v1174 = vadd.f32 %v1173, %v1111
    %v1175 = vadd.f32 %v1174, %v1112
    %v1176 = vadd.f32 %v1175, %v1113
    %v1177 = vadd.f32 %v1176, %v1114
    %v1178 = vadd.f32 %v1177, %v1115
    %v1179 = vadd.f32 %v1178, %v1116
    %v1180 = vadd.f32 %v1179, %v1117
    %v1181 = vadd.f32 %v1180, %v1118
    %v1182 = vadd.f32 %v1181, %v1119
    %v1183 = vadd.f32 %v1182, %v1120
    %v1184 = vadd.f32 %v1183, %v1121
    %v1185 = vadd.f32 %v1184, %v1122
    %v1186 = vadd.f32 %v1185, %v1123
    %v1187 = vadd.f32 %v1186, %v1124
    %v1188 = vadd.f32 %v1187, %v1125
    %v1189 = vadd.f32 %v1188, %v1126
    %v1190 = vadd.f32 %v1189, %v1127
    %v1191 = vadd.f32 %v1190, %v1128
    %v1192 = vadd.f32 %v1191, %v1129
    %v1193 = vadd.f32 %v1192, %v1130
    %v1194 = vadd.f32 %v1193, %v1131
    %v1195 = vadd.f32 %v1194, %v1132
    %v1196 = vadd.f32 %v1195, %v1133
    %v1197 = vadd.f32 %v1196, %v1134
    %v1198 = vadd.f32 %v1197, %v1135
    %v1199 = vadd.f32 %v1198, %v1136
    %v1200 = vadd.f32 %v1199, %v1137
    %v1201 = vadd.f32 %v1200, %v1138
    %v1202 = vadd.f32 %v1201, %v1139
    %v1203 = vadd.f32 %v1202, %v1140
    %v1204 = vadd.f32 %v1203, %v1141
    %v1205 = vadd.f32 %v1204, %v1142
    %v1206 = vadd.f32 %v1205, %v1143
    %v1207 = vadd.f32 %v1206, %v1144
    %v1208 = vadd.f32 %v1207, %v1145
    %v1209 = vadd.f32 %v1208, %v1146
    %v1210 = vadd.f32 %v1209, %v1147
    %v1211 = vadd.f32 %v1210, %v1148
    %v1212 = vrot.slane %v1211, 4
    %v1213 = vadd.f32 %v1211, %v1212
    %v1214 = vrot.slane %v1213, 2
    %v1215 = vadd.f32 %v1213, %v1214
    %v1216 = vrot.slane %v1215, 1
    %v1217 = vadd.f32 %v1215, %v1216
    %1218 = vst [vmem:[%s4] sm:$0x1] %v1217
  $region17: #{conv_bn_act.2} parent=0 // pred_fallthru
    _
  // Predicated region
  $region18: #{conv_bn_act.2} parent=0 // pred_check
    _
  $region19: #{conv_bn_act.2} parent=0 // pred_check_branch
    %1220 = sbr.rel (0) target = $region21
  $region20: #{conv_bn_act.2} parent=0 // pred_region
    _
  $region21: #{conv_bn_act.2} parent=0 // pred_fallthru
    _
  // Predicated region
  $region22: #{conv_bn_act.2} parent=0 // pred_check
    _
  $region23: #{conv_bn_act.2} parent=0 // pred_check_branch
    %1222 = sbr.rel (0) target = $region25
  $region24: #{conv_bn_act.2} parent=0 // pred_region
    _
  $region25: #{conv_bn_act.2} parent=0 // pred_fallthru
    _
  // Predicated region
  $region26: #{conv_bn_act.2} parent=0 // pred_check
    _
  $region27: #{conv_bn_act.2} parent=0 // pred_check_branch
    %1224 = sbr.rel (0) target = $region29
  $region28: #{conv_bn_act.2} parent=0 // pred_region
    _
  $region29: #{conv_bn_act.2} parent=0 // pred_fallthru
    _
  // Predicated region
  $region30: #{conv_bn_act.2} parent=0 // pred_check
    _
  $region31: #{conv_bn_act.2} parent=0 // pred_check_branch
    %1226 = sbr.rel (0) target = $region33
  $region32: #{conv_bn_act.2} parent=0 // pred_region
    _
  $region33: #{conv_bn_act.2} parent=0 // pred_fallthru
    _
  // Predicated region
  $region34: #{conv_bn_act.2} parent=0 // pred_check
    _
  $region35: #{conv_bn_act.2} parent=0 // pred_check_branch
    %1228 = sbr.rel (0) target = $region37
  $region36: #{conv_bn_act.2} parent=0 // pred_region
    _
  $region37: #{conv_bn_act.2} parent=0 // pred_fallthru
    _
  // Predicated region
  $region38: #{conv_bn_act.2} parent=0 // pred_check
    _
  $region39: #{conv_bn_act.2} parent=0 // pred_check_branch
    %1230 = sbr.rel (0) target = $region41
  $region40: #{conv_bn_act.2} parent=0 // pred_region
    _
  $region41: #{conv_bn_act.2} parent=0 // pred_fallthru
    _

</llo_original>
